<compile_context>
chip_gen: v7x
topology: tpu7x:2x2x1
jax: 0.10.0
libtpu: 0.0.40
codegen_flags: <defaults>
</compile_context>

<pallas_src>
import functools

import jax
import jax.numpy as jnp
from jax.experimental import pallas as pl
from jax.experimental.pallas import tpu as pltpu


# ----------------------------------------------------------------------------
# Small helpers
# ----------------------------------------------------------------------------
def _round_up(x, m):
    return ((x + m - 1) // m) * m


def _seq_tile(S, target=512):
    """Sequence tile: multiple of 8, <= target (whole padded S if small)."""
    if S <= target:
        return _round_up(S, 8)
    return target  # target is a multiple of 8 (and of 128 by default)


def _ff_tile(FF, target=2048):
    """MLP hidden tile: multiple of 128 dividing FF (or the whole FF)."""
    if FF <= target:
        return FF
    for t in range(target, 127, -128):
        if FF % t == 0:
            return t
    return FF


_VMEM_LIMIT_CACHE = None


def _vmem_limit_bytes():
    """~85% of per-core VMEM (leaves compiler headroom, esp. on v7x)."""
    global _VMEM_LIMIT_CACHE
    if _VMEM_LIMIT_CACHE is None:
        try:
            cap = int(pltpu.get_tpu_info().vmem_capacity_bytes)
            _VMEM_LIMIT_CACHE = max(32 * 1024 * 1024, int(cap * 0.85))
        except Exception:
            _VMEM_LIMIT_CACHE = 56 * 1024 * 1024
    return _VMEM_LIMIT_CACHE


def _weight_spec(shape, single_buffer):
    """Constant-index BlockSpec for resident weights (Buffered(1) if allowed)."""
    index_map = lambda *_: (0,) * len(shape)
    if single_buffer:
        return pl.BlockSpec(shape, index_map, pipeline_mode=pl.Buffered(1))
    return pl.BlockSpec(shape, index_map)


# ----------------------------------------------------------------------------
# K1: adaLN1 + Q/K/V projections (q/k/v written lane-dense, sm_scale in Wq)
# ----------------------------------------------------------------------------
def _adaln_qkv_kernel(x_ref, shift_ref, scale_ref,
                      wq_ref, wk_ref, wv_ref, bq_ref, bk_ref, bv_ref,
                      q_ref, k_ref, v_ref, *, eps):
    x = x_ref[0]                                        # (St, H) f32
    mu = jnp.mean(x, axis=-1, keepdims=True)
    var = jnp.mean((x - mu) ** 2, axis=-1, keepdims=True)
    xn = (x - mu) * jax.lax.rsqrt(var + eps)
    h1 = (xn * (1.0 + scale_ref[0]) + shift_ref[0]).astype(jnp.bfloat16)
    q_ref[0] = (jnp.dot(h1, wq_ref[...], preferred_element_type=jnp.float32)
                + bq_ref[...]).astype(q_ref.dtype)
    k_ref[0] = (jnp.dot(h1, wk_ref[...], preferred_element_type=jnp.float32)
                + bk_ref[...]).astype(k_ref.dtype)
    v_ref[0] = (jnp.dot(h1, wv_ref[...], preferred_element_type=jnp.float32)
                + bv_ref[...]).astype(v_ref.dtype)


# ----------------------------------------------------------------------------
# K2: flash-style attention (kv axis "arbitrary", per-head online softmax)
# ----------------------------------------------------------------------------
def _flash_attn_kernel(q_ref, k_ref, v_ref, o_ref, m_sc, l_sc, acc_sc, *,
                       num_heads, head_dim, seq_len, kv_tile, need_mask):
    ki = pl.program_id(2)
    nkv = pl.num_programs(2)

    @pl.when(ki == 0)
    def _init():
        m_sc[...] = jnp.full_like(m_sc, -jnp.inf)
        l_sc[...] = jnp.zeros_like(l_sc)
        acc_sc[...] = jnp.zeros_like(acc_sc)

    for h in range(num_heads):
        sl = slice(h * head_dim, (h + 1) * head_dim)
        q_h = q_ref[0, :, sl]                           # (Stq, dh) bf16 (scaled)
        k_h = k_ref[0, :, sl]                           # (Stk, dh) bf16
        v_h = v_ref[0, :, sl]                           # (Stk, dh) bf16
        s = jax.lax.dot_general(q_h, k_h, (((1,), (1,)), ((), ())),
                                preferred_element_type=jnp.float32)  # (Stq, Stk)
        if need_mask:
            col = ki * kv_tile + jax.lax.broadcasted_iota(jnp.int32, s.shape, 1)
            s = jnp.where(col < seq_len, s, -jnp.inf)
        m_prev = m_sc[h]                                # (Stq, 1)
        m_new = jnp.maximum(m_prev, jnp.max(s, axis=-1, keepdims=True))
        alpha = jnp.exp(m_prev - m_new)
        p = jnp.exp(s - m_new)
        l_sc[h] = alpha * l_sc[h] + jnp.sum(p, axis=-1, keepdims=True)
        acc_sc[h] = alpha * acc_sc[h] + jnp.dot(
            p.astype(jnp.bfloat16), v_h, preferred_element_type=jnp.float32)
        m_sc[h] = m_new

    @pl.when(ki == nkv - 1)
    def _finalize():
        for h in range(num_heads):
            sl = slice(h * head_dim, (h + 1) * head_dim)
            ctx_h = acc_sc[h] * pl.reciprocal(l_sc[h], approx=True)
            o_ref[0, :, sl] = ctx_h.astype(o_ref.dtype)


# ----------------------------------------------------------------------------
# K3: out-proj + layer_scale1 + residual + adaLN2 + MLP (streamed) + residual
# ----------------------------------------------------------------------------
def _proj_mlp_kernel(x_ref, ctx_ref, shift_ref, scale_ref,
                     wo_ref, bo_ref, l1_ref, l2_ref,
                     w1_ref, b1_ref, w2_ref, b2_ref,
                     out_ref, h2_sc, xres_sc, acc_sc, *, eps):
    f = pl.program_id(2)
    nf = pl.num_programs(2)

    @pl.when(f == 0)
    def _prologue():
        attn = jnp.dot(ctx_ref[0], wo_ref[...],
                       preferred_element_type=jnp.float32) + bo_ref[...]
        xr = x_ref[0] + attn * l1_ref[...]              # layer_scale1 + residual
        xres_sc[...] = xr
        mu = jnp.mean(xr, axis=-1, keepdims=True)
        var = jnp.mean((xr - mu) ** 2, axis=-1, keepdims=True)
        h2 = ((xr - mu) * jax.lax.rsqrt(var + eps)) * (1.0 + scale_ref[0]) \
            + shift_ref[0]
        h2_sc[...] = h2.astype(h2_sc.dtype)
        acc_sc[...] = jnp.zeros_like(acc_sc)

    ff = jnp.dot(h2_sc[...], w1_ref[...],
                 preferred_element_type=jnp.float32) + b1_ref[...]
    ff = jax.nn.gelu(ff, approximate=False)
    acc_sc[...] += jnp.dot(ff.astype(jnp.bfloat16), w2_ref[...],
                           preferred_element_type=jnp.float32)

    @pl.when(f == nf - 1)
    def _epilogue():
        out_ref[0] = (xres_sc[...]
                      + (acc_sc[...] + b2_ref[...]) * l2_ref[...]
                      ).astype(out_ref.dtype)


# ----------------------------------------------------------------------------
# One AdaDinov2Layer
# ----------------------------------------------------------------------------
def ada_dinov2_layer(x, shift1, scale1, shift2, scale2, p, *, num_heads,
                     seq_len, seq_tile, eps=1e-6, single_buffer_weights=True):
    B, S_pad, H = x.shape
    dh = H // num_heads
    St = seq_tile
    nq = S_pad // St
    FF = p["w1"].shape[1]
    fft = _ff_tile(FF)
    nf = FF // fft
    vmem = _vmem_limit_bytes()
    cp2 = pltpu.CompilerParams(
        dimension_semantics=("parallel", "parallel"), vmem_limit_bytes=vmem)
    cp3 = pltpu.CompilerParams(
        dimension_semantics=("parallel", "parallel", "arbitrary"),
        vmem_limit_bytes=vmem)
    wspec = functools.partial(_weight_spec, single_buffer=single_buffer_weights)

    # Fold the softmax scale into Wq/bq (zero runtime cost in the kernels).
    sm_scale = 1.0 / (dh ** 0.5)
    wq = (p["wq"].astype(jnp.float32) * sm_scale).astype(jnp.bfloat16)
    bq = p["bq"] * sm_scale

    # ---- K1: adaLN1 + Q/K/V projections ------------------------------------
    q, k, v = pl.pallas_call(
        functools.partial(_adaln_qkv_kernel, eps=eps),
        out_shape=(jax.ShapeDtypeStruct((B, S_pad, H), jnp.bfloat16),) * 3,
        grid_spec=pltpu.PrefetchScalarGridSpec(
            num_scalar_prefetch=0, grid=(B, nq),
            in_specs=[
                pl.BlockSpec((1, St, H), lambda b, s: (b, s, 0)),
                pl.BlockSpec((1, 1, H), lambda b, s: (b, 0, 0)),
                pl.BlockSpec((1, 1, H), lambda b, s: (b, 0, 0)),
                wspec((H, H)), wspec((H, H)), wspec((H, H)),
                wspec((1, H)), wspec((1, H)), wspec((1, H)),
            ],
            out_specs=[pl.BlockSpec((1, St, H), lambda b, s: (b, s, 0))] * 3,
        ),
        compiler_params=cp2,
    )(x, shift1, scale1, wq, p["wk"], p["wv"], bq, p["bk"], p["bv"])

    # ---- K2: flash attention (no head split/merge in HBM) -------------------
    ctx = pl.pallas_call(
        functools.partial(_flash_attn_kernel, num_heads=num_heads, head_dim=dh,
                          seq_len=seq_len, kv_tile=St,
                          need_mask=(seq_len != S_pad)),
        out_shape=jax.ShapeDtypeStruct((B, S_pad, H), jnp.bfloat16),
        grid_spec=pltpu.PrefetchScalarGridSpec(
            num_scalar_prefetch=0, grid=(B, nq, nq),
            in_specs=[
                pl.BlockSpec((1, St, H), lambda b, qi, ki: (b, qi, 0)),
                pl.BlockSpec((1, St, H), lambda b, qi, ki: (b, ki, 0)),
                pl.BlockSpec((1, St, H), lambda b, qi, ki: (b, ki, 0)),
            ],
            out_specs=pl.BlockSpec((1, St, H), lambda b, qi, ki: (b, qi, 0)),
            scratch_shapes=[
                pltpu.VMEM((num_heads, St, 1), jnp.float32),   # m
                pltpu.VMEM((num_heads, St, 1), jnp.float32),   # l
                pltpu.VMEM((num_heads, St, dh), jnp.float32),  # acc
            ],
        ),
        compiler_params=cp3,
    )(q, k, v)

    # ---- K3: out-proj + residual + adaLN2 + streamed MLP + residual ---------
    out = pl.pallas_call(
        functools.partial(_proj_mlp_kernel, eps=eps),
        out_shape=jax.ShapeDtypeStruct((B, S_pad, H), x.dtype),
        grid_spec=pltpu.PrefetchScalarGridSpec(
            num_scalar_prefetch=0, grid=(B, nq, nf),
            in_specs=[
                pl.BlockSpec((1, St, H), lambda b, s, f: (b, s, 0)),   # x
                pl.BlockSpec((1, St, H), lambda b, s, f: (b, s, 0)),   # ctx
                pl.BlockSpec((1, 1, H), lambda b, s, f: (b, 0, 0)),    # shift2
                pl.BlockSpec((1, 1, H), lambda b, s, f: (b, 0, 0)),    # scale2
                wspec((H, H)),                                         # wo
                wspec((1, H)),                                         # bo
                wspec((1, H)),                                         # l1
                wspec((1, H)),                                         # l2
                pl.BlockSpec((H, fft), lambda b, s, f: (0, f)),        # w1
                pl.BlockSpec((1, fft), lambda b, s, f: (0, f)),        # b1
                pl.BlockSpec((fft, H), lambda b, s, f: (f, 0)),        # w2
                wspec((1, H)),                                         # b2
            ],
            out_specs=pl.BlockSpec((1, St, H), lambda b, s, f: (b, s, 0)),
            scratch_shapes=[
                pltpu.VMEM((St, H), jnp.bfloat16),   # h2
                pltpu.VMEM((St, H), jnp.float32),    # x + attn residual
                pltpu.VMEM((St, H), jnp.float32),    # MLP accumulator
            ],
        ),
        compiler_params=cp3,
    )(x, ctx, shift2, scale2, p["wo"], p["bo"], p["l1"], p["l2"],
      p["w1"], p["b1"], p["w2"], p["b2"])
    return out


def ada_dinov2_encoder(hidden_states, modulation, layer_params, *, num_heads,
                       eps=1e-6, seq_tile_target=512,
                       single_buffer_weights=True):
    """AdaDinov2Encoder.forward (return_dict=False, last_hidden_state only)."""
    B, S, H = hidden_states.shape
    St = _seq_tile(S, seq_tile_target)
    S_pad = _round_up(S, St)
    x = hidden_states
    if S_pad != S:
        x = jnp.pad(x, ((0, 0), (0, S_pad - S), (0, 0)))
    # AdaLayerNorm modulation path hoisted out of the kernels (M=1 matmuls).
    mod_a = jax.nn.gelu(modulation, approximate=False)          # (B, H)
    for p in layer_params:
        m1 = mod_a @ p["wm1"] + p["bm1"]                        # (B, 2H)
        m2 = mod_a @ p["wm2"] + p["bm2"]
        shift1 = m1[:, :H].reshape(B, 1, H)
        scale1 = m1[:, H:].reshape(B, 1, H)
        shift2 = m2[:, :H].reshape(B, 1, H)
        scale2 = m2[:, H:].reshape(B, 1, H)
        x = ada_dinov2_layer(x, shift1, scale1, shift2, scale2, p,
                             num_heads=num_heads, seq_len=S, seq_tile=St,
                             eps=eps,
                             single_buffer_weights=single_buffer_weights)
    if S_pad != S:
        x = x[:, :S, :]
    return x


# ----------------------------------------------------------------------------
# Pure-JAX reference (for verification)
# ----------------------------------------------------------------------------
def _ref_layer(x, mod, p, num_heads, eps=1e-6):
    B, S, H = x.shape
    dh = H // num_heads
    f32 = lambda a: a.astype(jnp.float32)
    mod_a = jax.nn.gelu(mod, approximate=False)

    def ln(v):
        mu = v.mean(-1, keepdims=True)
        var = ((v - mu) ** 2).mean(-1, keepdims=True)
        return (v - mu) / jnp.sqrt(var + eps)

    m1 = mod_a @ p["wm1"] + p["bm1"]
    shift1, scale1 = m1[:, :H], m1[:, H:]
    h1 = ln(x) * (1.0 + scale1[:, None, :]) + shift1[:, None, :]

    q = h1 @ f32(p["wq"]) + p["bq"]
    k = h1 @ f32(p["wk"]) + p["bk"]
    v = h1 @ f32(p["wv"]) + p["bv"]
    qh = q.reshape(B, S, num_heads, dh).transpose(0, 2, 1, 3)
    kh = k.reshape(B, S, num_heads, dh).transpose(0, 2, 1, 3)
    vh = v.reshape(B, S, num_heads, dh).transpose(0, 2, 1, 3)
    s = jnp.einsum("bhqd,bhkd->bhqk", qh, kh) / jnp.sqrt(float(dh))
    pa = jax.nn.softmax(s, axis=-1)
    ctx = jnp.einsum("bhqk,bhkd->bhqd", pa, vh)
    ctx = ctx.transpose(0, 2, 1, 3).reshape(B, S, H)
    x = x + (ctx @ f32(p["wo"]) + p["bo"]) * p["l1"]

    m2 = mod_a @ p["wm2"] + p["bm2"]
    shift2, scale2 = m2[:, :H], m2[:, H:]
    h2 = ln(x) * (1.0 + scale2[:, None, :]) + shift2[:, None, :]
    ff = jax.nn.gelu(h2 @ f32(p["w1"]) + p["b1"], approximate=False)
    ff = (ff @ f32(p["w2"]) + p["b2"]) * p["l2"]
    return x + ff


def _ref_encoder(x, mod, layer_params, num_heads):
    for p in layer_params:
        x = _ref_layer(x, mod, p, num_heads)
    return x


# ----------------------------------------------------------------------------
# Deterministic parameter construction
# ----------------------------------------------------------------------------
def make_layer_params(key, hidden, mlp_hidden, layerscale_value=1.0):
    ks = jax.random.split(key, 16)
    n = lambda k, shape: (0.02 * jax.random.normal(k, shape)).astype(jnp.float32)
    bf = jnp.bfloat16
    return {
        # AdaLayerNorm modulation linears (hidden -> 2*hidden): shift | scale
        "wm1": n(ks[0], (hidden, 2 * hidden)), "bm1": n(ks[1], (2 * hidden,)),
        "wm2": n(ks[2], (hidden, 2 * hidden)), "bm2": n(ks[3], (2 * hidden,)),
        # q/k/v projections (bf16 weights feed the MXU natively)
        "wq": n(ks[4], (hidden, hidden)).astype(bf), "bq": n(ks[5], (1, hidden)),
        "wk": n(ks[6], (hidden, hidden)).astype(bf), "bk": n(ks[7], (1, hidden)),
        "wv": n(ks[8], (hidden, hidden)).astype(bf), "bv": n(ks[9], (1, hidden)),
        # attention output projection
        "wo": n(ks[10], (hidden, hidden)).astype(bf), "bo": n(ks[11], (1, hidden)),
        # layer scales (Dinov2LayerScale lambda1 / lambda2)
        "l1": jnp.full((1, hidden), layerscale_value, jnp.float32),
        "l2": jnp.full((1, hidden), layerscale_value, jnp.float32),
        # MLP
        "w1": n(ks[12], (hidden, mlp_hidden)).astype(bf),
        "b1": n(ks[13], (1, mlp_hidden)),
        "w2": n(ks[14], (mlp_hidden, hidden)).astype(bf),
        "b2": n(ks[15], (1, hidden)),
    }


if __name__ == "__main__":
    # Small config: hidden=32, 2 heads, mlp_ratio=4, 2 layers; batch=2, seq=8.
    B, S, H = 2, 8, 32
    NUM_HEADS = 2
    MLP = 4 * H
    NUM_LAYERS = 2

    key = jax.random.PRNGKey(0)
    kx, kmod, kp = jax.random.split(key, 3)
    hidden_states = jax.random.normal(kx, (B, S, H), dtype=jnp.float32)
    modulation = jax.random.normal(kmod, (B, H), dtype=jnp.float32)

    layer_keys = jax.random.split(kp, NUM_LAYERS)
    layer_params = [make_layer_params(k, H, MLP) for k in layer_keys]

    def run(single_buffer_weights):
        return ada_dinov2_encoder(hidden_states, modulation, layer_params,
                                  num_heads=NUM_HEADS,
                                  single_buffer_weights=single_buffer_weights)

    try:
        out = jax.block_until_ready(run(True))
    except Exception:
        # pipeline_mode=pl.Buffered(1) unsupported on this jax -> default bufs.
        out = jax.block_until_ready(run(False))

    ref = jax.block_until_ready(
        _ref_encoder(hidden_states, modulation, layer_params, NUM_HEADS))

    assert out.shape == (B, S, H) and out.dtype == jnp.float32
    max_err = float(jnp.max(jnp.abs(out - ref)))
    # bf16 matmuls + approx reciprocal in the kernel vs f32 reference.
    assert jnp.allclose(out, ref, atol=2e-2, rtol=2e-2), max_err
    print("KERNEL_OK")
</pallas_src>

<mosaic_0001>
module attributes {stable_mosaic.version = 11 : i64} {
  func.func @_adaln_qkv_kernel(%arg0: i32, %arg1: i32, %arg2: memref<1x8x32xf32, #tpu.memory_space<vmem>>, %arg3: memref<1x1x32xf32, #tpu.memory_space<vmem>>, %arg4: memref<1x1x32xf32, #tpu.memory_space<vmem>>, %arg5: memref<32x32xbf16, #tpu.memory_space<vmem>>, %arg6: memref<32x32xbf16, #tpu.memory_space<vmem>>, %arg7: memref<32x32xbf16, #tpu.memory_space<vmem>>, %arg8: memref<1x32xf32, #tpu.memory_space<vmem>>, %arg9: memref<1x32xf32, #tpu.memory_space<vmem>>, %arg10: memref<1x32xf32, #tpu.memory_space<vmem>>, %arg11: memref<1x8x32xbf16, #tpu.memory_space<vmem>>, %arg12: memref<1x8x32xbf16, #tpu.memory_space<vmem>>, %arg13: memref<1x8x32xbf16, #tpu.memory_space<vmem>>) attributes {dimension_semantics = [#tpu.dimension_semantics<parallel>, #tpu.dimension_semantics<parallel>], iteration_bounds = array<i64: 2, 1>, scalar_prefetch = 0 : i64, scratch_operands = 0 : i64, tpu.core_type = #tpu.core_type<tc>, window_params = [{transform_indices = @transform_0, window_bounds = array<i64: 1, 8, 32>}, {transform_indices = @transform_1, window_bounds = array<i64: 1, 1, 32>}, {transform_indices = @transform_2, window_bounds = array<i64: 1, 1, 32>}, {pipeline_mode = #tpu.pipeline_mode<synchronous>, transform_indices = @transform_3, window_bounds = array<i64: 32, 32>}, {pipeline_mode = #tpu.pipeline_mode<synchronous>, transform_indices = @transform_4, window_bounds = array<i64: 32, 32>}, {pipeline_mode = #tpu.pipeline_mode<synchronous>, transform_indices = @transform_5, window_bounds = array<i64: 32, 32>}, {pipeline_mode = #tpu.pipeline_mode<synchronous>, transform_indices = @transform_6, window_bounds = array<i64: 1, 32>}, {pipeline_mode = #tpu.pipeline_mode<synchronous>, transform_indices = @transform_7, window_bounds = array<i64: 1, 32>}, {pipeline_mode = #tpu.pipeline_mode<synchronous>, transform_indices = @transform_8, window_bounds = array<i64: 1, 32>}, {transform_indices = @transform_9, window_bounds = array<i64: 1, 8, 32>}, {transform_indices = @transform_10, window_bounds = array<i64: 1, 8, 32>}, {transform_indices = @transform_11, window_bounds = array<i64: 1, 8, 32>}]} {
    %c0 = arith.constant 0 : index
    %c0_0 = arith.constant 0 : index
    %c0_1 = arith.constant 0 : index
    %0 = vector.load %arg2[%c0, %c0_0, %c0_1] : memref<1x8x32xf32, #tpu.memory_space<vmem>>, vector<1x8x32xf32>
    %1 = vector.shape_cast %0 : vector<1x8x32xf32> to vector<8x32xf32>
    %cst = arith.constant dense<0.000000e+00> : vector<8xf32>
    %2 = vector.multi_reduction <add>, %1, %cst [1] : vector<8x32xf32> to vector<8xf32>
    %3 = vector.shape_cast %2 : vector<8xf32> to vector<8x1xf32>
    %cst_2 = arith.constant 3.200000e+01 : f32
    %4 = vector.broadcast %cst_2 : f32 to vector<8x1xf32>
    %5 = arith.divf %3, %4 : vector<8x1xf32>
    %6 = vector.broadcast %5 : vector<8x1xf32> to vector<8x32xf32>
    %7 = arith.subf %1, %6 : vector<8x32xf32>
    %8 = arith.mulf %7, %7 : vector<8x32xf32>
    %cst_3 = arith.constant dense<0.000000e+00> : vector<8xf32>
    %9 = vector.multi_reduction <add>, %8, %cst_3 [1] : vector<8x32xf32> to vector<8xf32>
    %10 = vector.shape_cast %9 : vector<8xf32> to vector<8x1xf32>
    %cst_4 = arith.constant 3.200000e+01 : f32
    %11 = vector.broadcast %cst_4 : f32 to vector<8x1xf32>
    %12 = arith.divf %10, %11 : vector<8x1xf32>
    %13 = vector.broadcast %5 : vector<8x1xf32> to vector<8x32xf32>
    %14 = arith.subf %1, %13 : vector<8x32xf32>
    %cst_5 = arith.constant 9.99999997E-7 : f32
    %15 = vector.broadcast %cst_5 : f32 to vector<8x1xf32>
    %16 = arith.addf %12, %15 : vector<8x1xf32>
    %17 = math.rsqrt %16 : vector<8x1xf32>
    %18 = vector.broadcast %17 : vector<8x1xf32> to vector<8x32xf32>
    %19 = arith.mulf %14, %18 : vector<8x32xf32>
    %c0_6 = arith.constant 0 : index
    %c0_7 = arith.constant 0 : index
    %c0_8 = arith.constant 0 : index
    %20 = vector.load %arg4[%c0_6, %c0_7, %c0_8] : memref<1x1x32xf32, #tpu.memory_space<vmem>>, vector<1x1x32xf32>
    %21 = vector.shape_cast %20 : vector<1x1x32xf32> to vector<1x32xf32>
    %cst_9 = arith.constant 1.000000e+00 : f32
    %22 = vector.broadcast %cst_9 : f32 to vector<1x32xf32>
    %23 = arith.addf %22, %21 : vector<1x32xf32>
    %24 = vector.broadcast %23 : vector<1x32xf32> to vector<8x32xf32>
    %25 = arith.mulf %19, %24 : vector<8x32xf32>
    %c0_10 = arith.constant 0 : index
    %c0_11 = arith.constant 0 : index
    %c0_12 = arith.constant 0 : index
    %26 = vector.load %arg3[%c0_10, %c0_11, %c0_12] : memref<1x1x32xf32, #tpu.memory_space<vmem>>, vector<1x1x32xf32>
    %27 = vector.shape_cast %26 : vector<1x1x32xf32> to vector<1x32xf32>
    %28 = vector.broadcast %27 : vector<1x32xf32> to vector<8x32xf32>
    %29 = arith.addf %25, %28 : vector<8x32xf32>
    %30 = arith.truncf %29 : vector<8x32xf32> to vector<8x32xbf16>
    %c0_13 = arith.constant 0 : index
    %c0_14 = arith.constant 0 : index
    %31 = vector.load %arg5[%c0_13, %c0_14] : memref<32x32xbf16, #tpu.memory_space<vmem>>, vector<32x32xbf16>
    %cst_15 = arith.constant dense<0.000000e+00> : vector<8x32xf32>
    %32 = tpu.matmul %30, %31, %cst_15 {dimension_numbers = #tpu.dot_dimension_numbers<[1], [0], [0], [1], [0, 0, 1, 1], [], []>} : vector<8x32xbf16>, vector<32x32xbf16>, vector<8x32xf32> -> vector<8x32xf32>
    %c0_16 = arith.constant 0 : index
    %c0_17 = arith.constant 0 : index
    %33 = vector.load %arg8[%c0_16, %c0_17] : memref<1x32xf32, #tpu.memory_space<vmem>>, vector<1x32xf32>
    %34 = vector.broadcast %33 : vector<1x32xf32> to vector<8x32xf32>
    %35 = arith.addf %32, %34 : vector<8x32xf32>
    %36 = arith.truncf %35 : vector<8x32xf32> to vector<8x32xbf16>
    %c0_18 = arith.constant 0 : index
    %c0_19 = arith.constant 0 : index
    %c0_20 = arith.constant 0 : index
    %37 = vector.load %arg11[%c0_18, %c0_19, %c0_20] : memref<1x8x32xbf16, #tpu.memory_space<vmem>>, vector<1x8x32xbf16>
    %38 = vector.shape_cast %37 : vector<1x8x32xbf16> to vector<8x32xbf16>
    %39 = vector.shape_cast %36 : vector<8x32xbf16> to vector<1x8x32xbf16>
    tpu.vector_store %arg11[%c0_18, %c0_19, %c0_20], %39 {strides = array<i32>} : memref<1x8x32xbf16, #tpu.memory_space<vmem>>, vector<1x8x32xbf16>,
    %c0_21 = arith.constant 0 : index
    %c0_22 = arith.constant 0 : index
    %40 = vector.load %arg6[%c0_21, %c0_22] : memref<32x32xbf16, #tpu.memory_space<vmem>>, vector<32x32xbf16>
    %cst_23 = arith.constant dense<0.000000e+00> : vector<8x32xf32>
    %41 = tpu.matmul %30, %40, %cst_23 {dimension_numbers = #tpu.dot_dimension_numbers<[1], [0], [0], [1], [0, 0, 1, 1], [], []>} : vector<8x32xbf16>, vector<32x32xbf16>, vector<8x32xf32> -> vector<8x32xf32>
    %c0_24 = arith.constant 0 : index
    %c0_25 = arith.constant 0 : index
    %42 = vector.load %arg9[%c0_24, %c0_25] : memref<1x32xf32, #tpu.memory_space<vmem>>, vector<1x32xf32>
    %43 = vector.broadcast %42 : vector<1x32xf32> to vector<8x32xf32>
    %44 = arith.addf %41, %43 : vector<8x32xf32>
    %45 = arith.truncf %44 : vector<8x32xf32> to vector<8x32xbf16>
    %c0_26 = arith.constant 0 : index
    %c0_27 = arith.constant 0 : index
    %c0_28 = arith.constant 0 : index
    %46 = vector.load %arg12[%c0_26, %c0_27, %c0_28] : memref<1x8x32xbf16, #tpu.memory_space<vmem>>, vector<1x8x32xbf16>
    %47 = vector.shape_cast %46 : vector<1x8x32xbf16> to vector<8x32xbf16>
    %48 = vector.shape_cast %45 : vector<8x32xbf16> to vector<1x8x32xbf16>
    tpu.vector_store %arg12[%c0_26, %c0_27, %c0_28], %48 {strides = array<i32>} : memref<1x8x32xbf16, #tpu.memory_space<vmem>>, vector<1x8x32xbf16>,
    %c0_29 = arith.constant 0 : index
    %c0_30 = arith.constant 0 : index
    %49 = vector.load %arg7[%c0_29, %c0_30] : memref<32x32xbf16, #tpu.memory_space<vmem>>, vector<32x32xbf16>
    %cst_31 = arith.constant dense<0.000000e+00> : vector<8x32xf32>
    %50 = tpu.matmul %30, %49, %cst_31 {dimension_numbers = #tpu.dot_dimension_numbers<[1], [0], [0], [1], [0, 0, 1, 1], [], []>} : vector<8x32xbf16>, vector<32x32xbf16>, vector<8x32xf32> -> vector<8x32xf32>
    %c0_32 = arith.constant 0 : index
    %c0_33 = arith.constant 0 : index
    %51 = vector.load %arg10[%c0_32, %c0_33] : memref<1x32xf32, #tpu.memory_space<vmem>>, vector<1x32xf32>
    %52 = vector.broadcast %51 : vector<1x32xf32> to vector<8x32xf32>
    %53 = arith.addf %50, %52 : vector<8x32xf32>
    %54 = arith.truncf %53 : vector<8x32xf32> to vector<8x32xbf16>
    %c0_34 = arith.constant 0 : index
    %c0_35 = arith.constant 0 : index
    %c0_36 = arith.constant 0 : index
    %55 = vector.load %arg13[%c0_34, %c0_35, %c0_36] : memref<1x8x32xbf16, #tpu.memory_space<vmem>>, vector<1x8x32xbf16>
    %56 = vector.shape_cast %55 : vector<1x8x32xbf16> to vector<8x32xbf16>
    %57 = vector.shape_cast %54 : vector<8x32xbf16> to vector<1x8x32xbf16>
    tpu.vector_store %arg13[%c0_34, %c0_35, %c0_36], %57 {strides = array<i32>} : memref<1x8x32xbf16, #tpu.memory_space<vmem>>, vector<1x8x32xbf16>,
    return
  }
  func.func @transform_0(%arg0: i32, %arg1: i32) -> (i32, i32, i32) {
    %c0_i32 = arith.constant 0 : i32
    %c0_i32_0 = arith.constant 0 : i32
    return %arg0, %arg1, %c0_i32 : i32, i32, i32
  }
  func.func @transform_1(%arg0: i32, %arg1: i32) -> (i32, i32, i32) {
    %c0_i32 = arith.constant 0 : i32
    %c0_i32_0 = arith.constant 0 : i32
    %c0_i32_1 = arith.constant 0 : i32
    return %arg0, %c0_i32, %c0_i32_0 : i32, i32, i32
  }
  func.func @transform_2(%arg0: i32, %arg1: i32) -> (i32, i32, i32) {
    %c0_i32 = arith.constant 0 : i32
    %c0_i32_0 = arith.constant 0 : i32
    %c0_i32_1 = arith.constant 0 : i32
    return %arg0, %c0_i32, %c0_i32_0 : i32, i32, i32
  }
  func.func @transform_3(%arg0: i32, %arg1: i32) -> (i32, i32) {
    %c0_i32 = arith.constant 0 : i32
    %c0_i32_0 = arith.constant 0 : i32
    %c0_i32_1 = arith.constant 0 : i32
    return %c0_i32, %c0_i32_0 : i32, i32
  }
  func.func @transform_4(%arg0: i32, %arg1: i32) -> (i32, i32) {
    %c0_i32 = arith.constant 0 : i32
    %c0_i32_0 = arith.constant 0 : i32
    %c0_i32_1 = arith.constant 0 : i32
    return %c0_i32, %c0_i32_0 : i32, i32
  }
  func.func @transform_5(%arg0: i32, %arg1: i32) -> (i32, i32) {
    %c0_i32 = arith.constant 0 : i32
    %c0_i32_0 = arith.constant 0 : i32
    %c0_i32_1 = arith.constant 0 : i32
    return %c0_i32, %c0_i32_0 : i32, i32
  }
  func.func @transform_6(%arg0: i32, %arg1: i32) -> (i32, i32) {
    %c0_i32 = arith.constant 0 : i32
    %c0_i32_0 = arith.constant 0 : i32
    %c0_i32_1 = arith.constant 0 : i32
    return %c0_i32, %c0_i32_0 : i32, i32
  }
  func.func @transform_7(%arg0: i32, %arg1: i32) -> (i32, i32) {
    %c0_i32 = arith.constant 0 : i32
    %c0_i32_0 = arith.constant 0 : i32
    %c0_i32_1 = arith.constant 0 : i32
    return %c0_i32, %c0_i32_0 : i32, i32
  }
  func.func @transform_8(%arg0: i32, %arg1: i32) -> (i32, i32) {
    %c0_i32 = arith.constant 0 : i32
    %c0_i32_0 = arith.constant 0 : i32
    %c0_i32_1 = arith.constant 0 : i32
    return %c0_i32, %c0_i32_0 : i32, i32
  }
  func.func @transform_9(%arg0: i32, %arg1: i32) -> (i32, i32, i32) {
    %c0_i32 = arith.constant 0 : i32
    %c0_i32_0 = arith.constant 0 : i32
    return %arg0, %arg1, %c0_i32 : i32, i32, i32
  }
  func.func @transform_10(%arg0: i32, %arg1: i32) -> (i32, i32, i32) {
    %c0_i32 = arith.constant 0 : i32
    %c0_i32_0 = arith.constant 0 : i32
    return %arg0, %arg1, %c0_i32 : i32, i32, i32
  }
  func.func @transform_11(%arg0: i32, %arg1: i32) -> (i32, i32, i32) {
    %c0_i32 = arith.constant 0 : i32
    %c0_i32_0 = arith.constant 0 : i32
    return %arg0, %arg1, %c0_i32 : i32, i32, i32
  }
}

module attributes {stable_mosaic.version = 11 : i64} {
  func.func @_adaln_qkv_kernel(%arg0: i32, %arg1: i32, %arg2: memref<1x8x32xf32, #tpu.memory_space<vmem>>, %arg3: memref<1x1x32xf32, #tpu.memory_space<vmem>>, %arg4: memref<1x1x32xf32, #tpu.memory_space<vmem>>, %arg5: memref<32x32xbf16, #tpu.memory_space<vmem>>, %arg6: memref<32x32xbf16, #tpu.memory_space<vmem>>, %arg7: memref<32x32xbf16, #tpu.memory_space<vmem>>, %arg8: memref<1x32xf32, #tpu.memory_space<vmem>>, %arg9: memref<1x32xf32, #tpu.memory_space<vmem>>, %arg10: memref<1x32xf32, #tpu.memory_space<vmem>>, %arg11: memref<1x8x32xbf16, #tpu.memory_space<vmem>>, %arg12: memref<1x8x32xbf16, #tpu.memory_space<vmem>>, %arg13: memref<1x8x32xbf16, #tpu.memory_space<vmem>>) attributes {dimension_semantics = [#tpu.dimension_semantics<parallel>, #tpu.dimension_semantics<parallel>], iteration_bounds = array<i64: 2, 1>, scalar_prefetch = 0 : i64, scratch_operands = 0 : i64, tpu.core_type = #tpu.core_type<tc>, window_params = [{transform_indices = @transform_0, window_bounds = array<i64: 1, 8, 32>}, {transform_indices = @transform_1, window_bounds = array<i64: 1, 1, 32>}, {transform_indices = @transform_2, window_bounds = array<i64: 1, 1, 32>}, {pipeline_mode = #tpu.pipeline_mode<synchronous>, transform_indices = @transform_3, window_bounds = array<i64: 32, 32>}, {pipeline_mode = #tpu.pipeline_mode<synchronous>, transform_indices = @transform_4, window_bounds = array<i64: 32, 32>}, {pipeline_mode = #tpu.pipeline_mode<synchronous>, transform_indices = @transform_5, window_bounds = array<i64: 32, 32>}, {pipeline_mode = #tpu.pipeline_mode<synchronous>, transform_indices = @transform_6, window_bounds = array<i64: 1, 32>}, {pipeline_mode = #tpu.pipeline_mode<synchronous>, transform_indices = @transform_7, window_bounds = array<i64: 1, 32>}, {pipeline_mode = #tpu.pipeline_mode<synchronous>, transform_indices = @transform_8, window_bounds = array<i64: 1, 32>}, {transform_indices = @transform_9, window_bounds = array<i64: 1, 8, 32>}, {transform_indices = @transform_10, window_bounds = array<i64: 1, 8, 32>}, {transform_indices = @transform_11, window_bounds = array<i64: 1, 8, 32>}]} {
    %c0 = arith.constant 0 : index
    %c0_0 = arith.constant 0 : index
    %c0_1 = arith.constant 0 : index
    %0 = vector.load %arg2[%c0, %c0_0, %c0_1] : memref<1x8x32xf32, #tpu.memory_space<vmem>>, vector<1x8x32xf32>
    %1 = vector.shape_cast %0 : vector<1x8x32xf32> to vector<8x32xf32>
    %cst = arith.constant dense<0.000000e+00> : vector<8xf32>
    %2 = vector.multi_reduction <add>, %1, %cst [1] : vector<8x32xf32> to vector<8xf32>
    %3 = vector.shape_cast %2 : vector<8xf32> to vector<8x1xf32>
    %cst_2 = arith.constant 3.200000e+01 : f32
    %4 = vector.broadcast %cst_2 : f32 to vector<8x1xf32>
    %5 = arith.divf %3, %4 : vector<8x1xf32>
    %6 = vector.broadcast %5 : vector<8x1xf32> to vector<8x32xf32>
    %7 = arith.subf %1, %6 : vector<8x32xf32>
    %8 = arith.mulf %7, %7 : vector<8x32xf32>
    %cst_3 = arith.constant dense<0.000000e+00> : vector<8xf32>
    %9 = vector.multi_reduction <add>, %8, %cst_3 [1] : vector<8x32xf32> to vector<8xf32>
    %10 = vector.shape_cast %9 : vector<8xf32> to vector<8x1xf32>
    %cst_4 = arith.constant 3.200000e+01 : f32
    %11 = vector.broadcast %cst_4 : f32 to vector<8x1xf32>
    %12 = arith.divf %10, %11 : vector<8x1xf32>
    %13 = vector.broadcast %5 : vector<8x1xf32> to vector<8x32xf32>
    %14 = arith.subf %1, %13 : vector<8x32xf32>
    %cst_5 = arith.constant 9.99999997E-7 : f32
    %15 = vector.broadcast %cst_5 : f32 to vector<8x1xf32>
    %16 = arith.addf %12, %15 : vector<8x1xf32>
    %17 = math.rsqrt %16 : vector<8x1xf32>
    %18 = vector.broadcast %17 : vector<8x1xf32> to vector<8x32xf32>
    %19 = arith.mulf %14, %18 : vector<8x32xf32>
    %c0_6 = arith.constant 0 : index
    %c0_7 = arith.constant 0 : index
    %c0_8 = arith.constant 0 : index
    %20 = vector.load %arg4[%c0_6, %c0_7, %c0_8] : memref<1x1x32xf32, #tpu.memory_space<vmem>>, vector<1x1x32xf32>
    %21 = vector.shape_cast %20 : vector<1x1x32xf32> to vector<1x32xf32>
    %cst_9 = arith.constant 1.000000e+00 : f32
    %22 = vector.broadcast %cst_9 : f32 to vector<1x32xf32>
    %23 = arith.addf %22, %21 : vector<1x32xf32>
    %24 = vector.broadcast %23 : vector<1x32xf32> to vector<8x32xf32>
    %25 = arith.mulf %19, %24 : vector<8x32xf32>
    %c0_10 = arith.constant 0 : index
    %c0_11 = arith.constant 0 : index
    %c0_12 = arith.constant 0 : index
    %26 = vector.load %arg3[%c0_10, %c0_11, %c0_12] : memref<1x1x32xf32, #tpu.memory_space<vmem>>, vector<1x1x32xf32>
    %27 = vector.shape_cast %26 : vector<1x1x32xf32> to vector<1x32xf32>
    %28 = vector.broadcast %27 : vector<1x32xf32> to vector<8x32xf32>
    %29 = arith.addf %25, %28 : vector<8x32xf32>
    %30 = arith.truncf %29 : vector<8x32xf32> to vector<8x32xbf16>
    %c0_13 = arith.constant 0 : index
    %c0_14 = arith.constant 0 : index
    %31 = vector.load %arg5[%c0_13, %c0_14] : memref<32x32xbf16, #tpu.memory_space<vmem>>, vector<32x32xbf16>
    %cst_15 = arith.constant dense<0.000000e+00> : vector<8x32xf32>
    %32 = tpu.matmul %30, %31, %cst_15 {dimension_numbers = #tpu.dot_dimension_numbers<[1], [0], [0], [1], [0, 0, 1, 1], [], []>} : vector<8x32xbf16>, vector<32x32xbf16>, vector<8x32xf32> -> vector<8x32xf32>
    %c0_16 = arith.constant 0 : index
    %c0_17 = arith.constant 0 : index
    %33 = vector.load %arg8[%c0_16, %c0_17] : memref<1x32xf32, #tpu.memory_space<vmem>>, vector<1x32xf32>
    %34 = vector.broadcast %33 : vector<1x32xf32> to vector<8x32xf32>
    %35 = arith.addf %32, %34 : vector<8x32xf32>
    %36 = arith.truncf %35 : vector<8x32xf32> to vector<8x32xbf16>
    %c0_18 = arith.constant 0 : index
    %c0_19 = arith.constant 0 : index
    %c0_20 = arith.constant 0 : index
    %37 = vector.load %arg11[%c0_18, %c0_19, %c0_20] : memref<1x8x32xbf16, #tpu.memory_space<vmem>>, vector<1x8x32xbf16>
    %38 = vector.shape_cast %37 : vector<1x8x32xbf16> to vector<8x32xbf16>
    %39 = vector.shape_cast %36 : vector<8x32xbf16> to vector<1x8x32xbf16>
    tpu.vector_store %arg11[%c0_18, %c0_19, %c0_20], %39 {strides = array<i32>} : memref<1x8x32xbf16, #tpu.memory_space<vmem>>, vector<1x8x32xbf16>,
    %c0_21 = arith.constant 0 : index
    %c0_22 = arith.constant 0 : index
    %40 = vector.load %arg6[%c0_21, %c0_22] : memref<32x32xbf16, #tpu.memory_space<vmem>>, vector<32x32xbf16>
    %cst_23 = arith.constant dense<0.000000e+00> : vector<8x32xf32>
    %41 = tpu.matmul %30, %40, %cst_23 {dimension_numbers = #tpu.dot_dimension_numbers<[1], [0], [0], [1], [0, 0, 1, 1], [], []>} : vector<8x32xbf16>, vector<32x32xbf16>, vector<8x32xf32> -> vector<8x32xf32>
    %c0_24 = arith.constant 0 : index
    %c0_25 = arith.constant 0 : index
    %42 = vector.load %arg9[%c0_24, %c0_25] : memref<1x32xf32, #tpu.memory_space<vmem>>, vector<1x32xf32>
    %43 = vector.broadcast %42 : vector<1x32xf32> to vector<8x32xf32>
    %44 = arith.addf %41, %43 : vector<8x32xf32>
    %45 = arith.truncf %44 : vector<8x32xf32> to vector<8x32xbf16>
    %c0_26 = arith.constant 0 : index
    %c0_27 = arith.constant 0 : index
    %c0_28 = arith.constant 0 : index
    %46 = vector.load %arg12[%c0_26, %c0_27, %c0_28] : memref<1x8x32xbf16, #tpu.memory_space<vmem>>, vector<1x8x32xbf16>
    %47 = vector.shape_cast %46 : vector<1x8x32xbf16> to vector<8x32xbf16>
    %48 = vector.shape_cast %45 : vector<8x32xbf16> to vector<1x8x32xbf16>
    tpu.vector_store %arg12[%c0_26, %c0_27, %c0_28], %48 {strides = array<i32>} : memref<1x8x32xbf16, #tpu.memory_space<vmem>>, vector<1x8x32xbf16>,
    %c0_29 = arith.constant 0 : index
    %c0_30 = arith.constant 0 : index
    %49 = vector.load %arg7[%c0_29, %c0_30] : memref<32x32xbf16, #tpu.memory_space<vmem>>, vector<32x32xbf16>
    %cst_31 = arith.constant dense<0.000000e+00> : vector<8x32xf32>
    %50 = tpu.matmul %30, %49, %cst_31 {dimension_numbers = #tpu.dot_dimension_numbers<[1], [0], [0], [1], [0, 0, 1, 1], [], []>} : vector<8x32xbf16>, vector<32x32xbf16>, vector<8x32xf32> -> vector<8x32xf32>
    %c0_32 = arith.constant 0 : index
    %c0_33 = arith.constant 0 : index
    %51 = vector.load %arg10[%c0_32, %c0_33] : memref<1x32xf32, #tpu.memory_space<vmem>>, vector<1x32xf32>
    %52 = vector.broadcast %51 : vector<1x32xf32> to vector<8x32xf32>
    %53 = arith.addf %50, %52 : vector<8x32xf32>
    %54 = arith.truncf %53 : vector<8x32xf32> to vector<8x32xbf16>
    %c0_34 = arith.constant 0 : index
    %c0_35 = arith.constant 0 : index
    %c0_36 = arith.constant 0 : index
    %55 = vector.load %arg13[%c0_34, %c0_35, %c0_36] : memref<1x8x32xbf16, #tpu.memory_space<vmem>>, vector<1x8x32xbf16>
    %56 = vector.shape_cast %55 : vector<1x8x32xbf16> to vector<8x32xbf16>
    %57 = vector.shape_cast %54 : vector<8x32xbf16> to vector<1x8x32xbf16>
    tpu.vector_store %arg13[%c0_34, %c0_35, %c0_36], %57 {strides = array<i32>} : memref<1x8x32xbf16, #tpu.memory_space<vmem>>, vector<1x8x32xbf16>,
    return
  }
  func.func @transform_0(%arg0: i32, %arg1: i32) -> (i32, i32, i32) {
    %c0_i32 = arith.constant 0 : i32
    %c0_i32_0 = arith.constant 0 : i32
    return %arg0, %arg1, %c0_i32 : i32, i32, i32
  }
  func.func @transform_1(%arg0: i32, %arg1: i32) -> (i32, i32, i32) {
    %c0_i32 = arith.constant 0 : i32
    %c0_i32_0 = arith.constant 0 : i32
    %c0_i32_1 = arith.constant 0 : i32
    return %arg0, %c0_i32, %c0_i32_0 : i32, i32, i32
  }
  func.func @transform_2(%arg0: i32, %arg1: i32) -> (i32, i32, i32) {
    %c0_i32 = arith.constant 0 : i32
    %c0_i32_0 = arith.constant 0 : i32
    %c0_i32_1 = arith.constant 0 : i32
    return %arg0, %c0_i32, %c0_i32_0 : i32, i32, i32
  }
  func.func @transform_3(%arg0: i32, %arg1: i32) -> (i32, i32) {
    %c0_i32 = arith.constant 0 : i32
    %c0_i32_0 = arith.constant 0 : i32
    %c0_i32_1 = arith.constant 0 : i32
    return %c0_i32, %c0_i32_0 : i32, i32
  }
  func.func @transform_4(%arg0: i32, %arg1: i32) -> (i32, i32) {
    %c0_i32 = arith.constant 0 : i32
    %c0_i32_0 = arith.constant 0 : i32
    %c0_i32_1 = arith.constant 0 : i32
    return %c0_i32, %c0_i32_0 : i32, i32
  }
  func.func @transform_5(%arg0: i32, %arg1: i32) -> (i32, i32) {
    %c0_i32 = arith.constant 0 : i32
    %c0_i32_0 = arith.constant 0 : i32
    %c0_i32_1 = arith.constant 0 : i32
    return %c0_i32, %c0_i32_0 : i32, i32
  }
  func.func @transform_6(%arg0: i32, %arg1: i32) -> (i32, i32) {
    %c0_i32 = arith.constant 0 : i32
    %c0_i32_0 = arith.constant 0 : i32
    %c0_i32_1 = arith.constant 0 : i32
    return %c0_i32, %c0_i32_0 : i32, i32
  }
  func.func @transform_7(%arg0: i32, %arg1: i32) -> (i32, i32) {
    %c0_i32 = arith.constant 0 : i32
    %c0_i32_0 = arith.constant 0 : i32
    %c0_i32_1 = arith.constant 0 : i32
    return %c0_i32, %c0_i32_0 : i32, i32
  }
  func.func @transform_8(%arg0: i32, %arg1: i32) -> (i32, i32) {
    %c0_i32 = arith.constant 0 : i32
    %c0_i32_0 = arith.constant 0 : i32
    %c0_i32_1 = arith.constant 0 : i32
    return %c0_i32, %c0_i32_0 : i32, i32
  }
  func.func @transform_9(%arg0: i32, %arg1: i32) -> (i32, i32, i32) {
    %c0_i32 = arith.constant 0 : i32
    %c0_i32_0 = arith.constant 0 : i32
    return %arg0, %arg1, %c0_i32 : i32, i32, i32
  }
  func.func @transform_10(%arg0: i32, %arg1: i32) -> (i32, i32, i32) {
    %c0_i32 = arith.constant 0 : i32
    %c0_i32_0 = arith.constant 0 : i32
    return %arg0, %arg1, %c0_i32 : i32, i32, i32
  }
  func.func @transform_11(%arg0: i32, %arg1: i32) -> (i32, i32, i32) {
    %c0_i32 = arith.constant 0 : i32
    %c0_i32_0 = arith.constant 0 : i32
    return %arg0, %arg1, %c0_i32 : i32, i32, i32
  }
}

</mosaic_0001>

<llo_original>
// kernel: tpu_custom_call.1
$region0: #{tpu_custom_call.1}
  #allocation0 [shape = 'u32[]', space=smem, size = 0x4, offset = 0x4, fixed_abs, tag = 'smem constant byte address 0x4 - core index']
  #allocation1 [shape = 'u32[144,128]{1,0:T(1,128)}', space=vmem, size = 0x12000, scoped, tag = 'internal scratch']
  %s0 = inlined_call_operand.hbm [shape: f32[2,8,32], index: 0, kind: input, shape index: {}]
  %s1 = inlined_call_operand.vmem [shape: f32[2,1,32], index: 1, kind: input, shape index: {}]
  %s2 = inlined_call_operand.hbm [shape: f32[2,1,32], index: 2, kind: input, shape index: {}]
  %s3 = inlined_call_operand.hbm [shape: bf16[32,32], index: 3, kind: input, shape index: {}]
  %s4 = inlined_call_operand.hbm [shape: bf16[32,32], index: 4, kind: input, shape index: {}]
  %s5 = inlined_call_operand.vmem [shape: bf16[32,32], index: 5, kind: input, shape index: {}]
  %s6 = inlined_call_operand.vmem [shape: f32[1,32], index: 6, kind: input, shape index: {}]
  %s7 = inlined_call_operand.vmem [shape: f32[1,32], index: 7, kind: input, shape index: {}]
  %s8 = inlined_call_operand.vmem [shape: f32[1,32], index: 8, kind: input, shape index: {}]
  %s9 = inlined_call_operand.hbm [shape: bf16[2,8,32], index: 9, kind: output, shape index: {0}]
  %s10 = inlined_call_operand.hbm [shape: bf16[2,8,32], index: 10, kind: output, shape index: {1}]
  %s11 = inlined_call_operand.hbm [shape: bf16[2,8,32], index: 11, kind: output, shape index: {2}]
  %12 = xla_tuple %s9, %s10, %s11
  %s13 = sld [smem:[#allocation0]]
  $region101: #{tpu_custom_call.1} parent=0
    _
  %s15 = ssub.s32 1, %s13
  %s16 = scalar_select 0, %s15, %s13
  $region1: #{tpu_custom_call.1} parent=0
    #allocation2 [shape = 'u8[8192]{0}', space=vmem, size = 0x2000, scoped, tag = 'input window, operand 0']
    #allocation3 [shape = 's32[2]{0}', space=sflag, size = 0x8, scoped, tag = 'scoped memory for tpu_custom_call.1']
    #allocation4 [shape = 's32[2]{0}', space=sflag, size = 0x8, scoped, tag = 'scoped memory for tpu_custom_call.1']
    #allocation5 [shape = 'u8[1024]{0}', space=vmem, size = 0x400, scoped, tag = 'input window, operand 2']
    #allocation6 [shape = 's32[2]{0}', space=sflag, size = 0x8, scoped, tag = 'scoped memory for tpu_custom_call.1']
    #allocation7 [shape = 'u8[8192]{0}', space=vmem, size = 0x2000, scoped, tag = 'input window, operand 3, single buffered']
    #allocation8 [shape = 'u8[8192]{0}', space=vmem, size = 0x2000, scoped, tag = 'input window, operand 4, single buffered']
    #allocation9 [shape = 's32[1]{0}', space=sflag, size = 0x4, scoped, tag = 'scoped memory for tpu_custom_call.1']
    #allocation10 [shape = 'u8[4096]{0}', space=vmem, size = 0x1000, scoped, tag = 'output window, operand 0']
    #allocation11 [shape = 'u8[4096]{0}', space=vmem, size = 0x1000, scoped, tag = 'output window, operand 1']
    #allocation12 [shape = 's32[2]{0}', space=sflag, size = 0x8, scoped, tag = 'scoped memory for tpu_custom_call.1']
    #allocation13 [shape = 'u8[4096]{0}', space=vmem, size = 0x1000, scoped, tag = 'output window, operand 2']
    %17 = vsyncpa [#allocation3], 0
    %s18 = scalar_lea.sflag [#allocation3], 1
    %19 = vsyncpa %s18, 0
    %20 = vsyncpa [#allocation6], 0
    %s21 = scalar_lea.sflag [#allocation6], 1
    %22 = vsyncpa %s21, 0
    %23 = vsyncpa [#allocation9], 0
    %24 = vsyncpa [#allocation4], 0
    %s25 = scalar_lea.sflag [#allocation4], 1
    %26 = vsyncpa %s25, 0
    %27 = vsyncpa [#allocation12], 0
    %s28 = scalar_lea.sflag [#allocation12], 1
    %29 = vsyncpa %s28, 0
    loop: start=0, step=1, limit=4
    $region2: #{tpu_custom_call.1} parent=1 // loop_pre_header
      _
    $region3: #{tpu_custom_call.1} parent=1 // loop_header
      %s31 = sphi 0, %s35
      %p32 = scmp.ge.s32.totalorder %s31, 4
      %s38 = sphi 0, %s50
      %s39 = sphi 0, %s46
      %s40 = sphi 0, %s38
      %s41 = sphi 0, %s39
      %s42 = sphi 0, %s40
      %s43 = sphi 0, %s41
      %s55 = sphi 0, %s57
      %s58 = sphi 0, %s55
      %s59 = sphi 0, %s58
      %s75 = sphi 0, %s59
      %s81 = sphi 0, %s83
      %s84 = sphi 0, %s81
      %s85 = sphi 0, %s84
      %s101 = sphi 0, %s85
      %s107 = sphi 0, %s109
      %s110 = sphi 0, %s107
      %s111 = sphi 0, %s110
      %s127 = sphi 0, %s111
      %s131 = sphi 0, %s131
      %s133 = sphi 0, %s131
      %s134 = sphi 0, %s133
      %s148 = sphi 0, %s134
      %s152 = sphi 0, %s152
      %s154 = sphi 0, %s152
      %s155 = sphi 0, %s154
      %s169 = sphi 0, %s155
      %s173 = sphi 0, %s173
      %s175 = sphi 0, %s173
      %s176 = sphi 0, %s175
      %s190 = sphi 0, %s176
      %s194 = sphi 0, %s194
      %s196 = sphi 0, %s194
      %s197 = sphi 0, %s196
      %s211 = sphi 0, %s197
      %s215 = sphi 0, %s215
      %s217 = sphi 0, %s215
      %s218 = sphi 0, %s217
      %s232 = sphi 0, %s218
      %s236 = sphi 0, %s236
      %s238 = sphi 0, %s236
      %s239 = sphi 0, %s238
      %s253 = sphi 0, %s239
      %s261 = sphi 0, %s263
      %s264 = sphi 0, %s261
      %s265 = sphi 0, %s264
      %s281 = sphi 0, %s265
      %s289 = sphi 0, %s291
      %s292 = sphi 0, %s289
      %s293 = sphi 0, %s292
      %s309 = sphi 0, %s293
      %s317 = sphi 0, %s319
      %s320 = sphi 0, %s317
      %s321 = sphi 0, %s320
      %s337 = sphi 0, %s321
    $region4: #{tpu_custom_call.1} parent=1 // loop_header_branch
      %34 = sbr.rel (%p32) target = $region8
    $region5: #{tpu_custom_call.1} parent=1 // loop_body
      %s36 = ssub.s32 %s31, 1
      %s37 = ssub.s32 %s31, 2
      %s44 = sadd.s32 1, %s39
      %p45 = scmp.ge.s32.totalorder %s44, 1
      %s46 = scalar_select %p45, 0, %s44
      %s47 = sadd.s32 1, %s38
      %s48 = scalar_select %p45, %s47, %s38
      %p49 = scmp.ge.s32.totalorder %s48, 2
      %s50 = scalar_select %p49, 0, %s48
      %s51 = ssub.s32 %s38, %s50
      %s52 = ssub.s32 %s39, %s46
      %s53 = sor.u32 %s51, %s52
      %p54 = scmp.eq.s32.totalorder %s53, 0
      %s56 = sadd.s32 %s55, 1
      %s57 = scalar_select %p54, %s55, %s56
      %p60 = pneg %p54
      %p61 = scmp.eq.s32.totalorder %s31, 1
      %p62 = por %p60, %p61
      %p63 = scmp.ne.s32.totalorder %s55, %s58
      %p64 = scmp.eq.s32.totalorder %s31, 0
      %p65 = por %p63, %p64
      %p66 = scmp.ne.s32.totalorder %s55, %s58
      %p67 = scmp.eq.s32.totalorder %s36, 1
      %p68 = por %p66, %p67
      %p69 = scmp.ne.s32.totalorder %s58, %s59
      %p70 = scmp.eq.s32.totalorder %s36, 0
      %p71 = por %p69, %p70
      %p72 = scmp.ne.s32.totalorder %s58, %s59
      %p73 = scmp.eq.s32.totalorder %s37, 1
      %p74 = por %p72, %p73
      %p76 = scmp.ne.s32.totalorder %s59, %s75
      %p77 = scmp.eq.s32.totalorder %s37, 0
      %p78 = por %p76, %p77
      %s79 = ssub.s32 %s38, %s50
      %p80 = scmp.eq.s32.totalorder %s79, 0
      %s82 = sadd.s32 %s81, 1
      %s83 = scalar_select %p80, %s81, %s82
      %p86 = pneg %p80
      %p87 = scmp.eq.s32.totalorder %s31, 1
      %p88 = por %p86, %p87
      %p89 = scmp.ne.s32.totalorder %s81, %s84
      %p90 = scmp.eq.s32.totalorder %s31, 0
      %p91 = por %p89, %p90
      %p92 = scmp.ne.s32.totalorder %s81, %s84
      %p93 = scmp.eq.s32.totalorder %s36, 1
      %p94 = por %p92, %p93
      %p95 = scmp.ne.s32.totalorder %s84, %s85
      %p96 = scmp.eq.s32.totalorder %s36, 0
      %p97 = por %p95, %p96
      %p98 = scmp.ne.s32.totalorder %s84, %s85
      %p99 = scmp.eq.s32.totalorder %s37, 1
      %p100 = por %p98, %p99
      %p102 = scmp.ne.s32.totalorder %s85, %s101
      %p103 = scmp.eq.s32.totalorder %s37, 0
      %p104 = por %p102, %p103
      %s105 = ssub.s32 %s38, %s50
      %p106 = scmp.eq.s32.totalorder %s105, 0
      %s108 = sadd.s32 %s107, 1
      %s109 = scalar_select %p106, %s107, %s108
      %p112 = pneg %p106
      %p113 = scmp.eq.s32.totalorder %s31, 1
      %p114 = por %p112, %p113
      %p115 = scmp.ne.s32.totalorder %s107, %s110
      %p116 = scmp.eq.s32.totalorder %s31, 0
      %p117 = por %p115, %p116
      %p118 = scmp.ne.s32.totalorder %s107, %s110
      %p119 = scmp.eq.s32.totalorder %s36, 1
      %p120 = por %p118, %p119
      %p121 = scmp.ne.s32.totalorder %s110, %s111
      %p122 = scmp.eq.s32.totalorder %s36, 0
      %p123 = por %p121, %p122
      %p124 = scmp.ne.s32.totalorder %s110, %s111
      %p125 = scmp.eq.s32.totalorder %s37, 1
      %p126 = por %p124, %p125
      %p128 = scmp.ne.s32.totalorder %s111, %s127
      %p129 = scmp.eq.s32.totalorder %s37, 0
      %p130 = por %p128, %p129
      %s132 = sadd.s32 %s131, 1
      %p135 = scmp.eq.s32.totalorder %s31, 1
      %p136 = scmp.ne.s32.totalorder %s131, %s133
      %p137 = scmp.eq.s32.totalorder %s31, 0
      %p138 = por %p136, %p137
      %p139 = scmp.ne.s32.totalorder %s131, %s133
      %p140 = scmp.eq.s32.totalorder %s36, 1
      %p141 = por %p139, %p140
      %p142 = scmp.ne.s32.totalorder %s133, %s134
      %p143 = scmp.eq.s32.totalorder %s36, 0
      %p144 = por %p142, %p143
      %p145 = scmp.ne.s32.totalorder %s133, %s134
      %p146 = scmp.eq.s32.totalorder %s37, 1
      %p147 = por %p145, %p146
      %p149 = scmp.ne.s32.totalorder %s134, %s148
      %p150 = scmp.eq.s32.totalorder %s37, 0
      %p151 = por %p149, %p150
      %s153 = sadd.s32 %s152, 1
      %p156 = scmp.eq.s32.totalorder %s31, 1
      %p157 = scmp.ne.s32.totalorder %s152, %s154
      %p158 = scmp.eq.s32.totalorder %s31, 0
      %p159 = por %p157, %p158
      %p160 = scmp.ne.s32.totalorder %s152, %s154
      %p161 = scmp.eq.s32.totalorder %s36, 1
      %p162 = por %p160, %p161
      %p163 = scmp.ne.s32.totalorder %s154, %s155
      %p164 = scmp.eq.s32.totalorder %s36, 0
      %p165 = por %p163, %p164
      %p166 = scmp.ne.s32.totalorder %s154, %s155
      %p167 = scmp.eq.s32.totalorder %s37, 1
      %p168 = por %p166, %p167
      %p170 = scmp.ne.s32.totalorder %s155, %s169
      %p171 = scmp.eq.s32.totalorder %s37, 0
      %p172 = por %p170, %p171
      %s174 = sadd.s32 %s173, 1
      %p177 = scmp.eq.s32.totalorder %s31, 1
      %p178 = scmp.ne.s32.totalorder %s173, %s175
      %p179 = scmp.eq.s32.totalorder %s31, 0
      %p180 = por %p178, %p179
      %p181 = scmp.ne.s32.totalorder %s173, %s175
      %p182 = scmp.eq.s32.totalorder %s36, 1
      %p183 = por %p181, %p182
      %p184 = scmp.ne.s32.totalorder %s175, %s176
      %p185 = scmp.eq.s32.totalorder %s36, 0
      %p186 = por %p184, %p185
      %p187 = scmp.ne.s32.totalorder %s175, %s176
      %p188 = scmp.eq.s32.totalorder %s37, 1
      %p189 = por %p187, %p188
      %p191 = scmp.ne.s32.totalorder %s176, %s190
      %p192 = scmp.eq.s32.totalorder %s37, 0
      %p193 = por %p191, %p192
      %s195 = sadd.s32 %s194, 1
      %p198 = scmp.eq.s32.totalorder %s31, 1
      %p199 = scmp.ne.s32.totalorder %s194, %s196
      %p200 = scmp.eq.s32.totalorder %s31, 0
      %p201 = por %p199, %p200
      %p202 = scmp.ne.s32.totalorder %s194, %s196
      %p203 = scmp.eq.s32.totalorder %s36, 1
      %p204 = por %p202, %p203
      %p205 = scmp.ne.s32.totalorder %s196, %s197
      %p206 = scmp.eq.s32.totalorder %s36, 0
      %p207 = por %p205, %p206
      %p208 = scmp.ne.s32.totalorder %s196, %s197
      %p209 = scmp.eq.s32.totalorder %s37, 1
      %p210 = por %p208, %p209
      %p212 = scmp.ne.s32.totalorder %s197, %s211
      %p213 = scmp.eq.s32.totalorder %s37, 0
      %p214 = por %p212, %p213
      %s216 = sadd.s32 %s215, 1
      %p219 = scmp.eq.s32.totalorder %s31, 1
      %p220 = scmp.ne.s32.totalorder %s215, %s217
      %p221 = scmp.eq.s32.totalorder %s31, 0
      %p222 = por %p220, %p221
      %p223 = scmp.ne.s32.totalorder %s215, %s217
      %p224 = scmp.eq.s32.totalorder %s36, 1
      %p225 = por %p223, %p224
      %p226 = scmp.ne.s32.totalorder %s217, %s218
      %p227 = scmp.eq.s32.totalorder %s36, 0
      %p228 = por %p226, %p227
      %p229 = scmp.ne.s32.totalorder %s217, %s218
      %p230 = scmp.eq.s32.totalorder %s37, 1
      %p231 = por %p229, %p230
      %p233 = scmp.ne.s32.totalorder %s218, %s232
      %p234 = scmp.eq.s32.totalorder %s37, 0
      %p235 = por %p233, %p234
      %s237 = sadd.s32 %s236, 1
      %p240 = scmp.eq.s32.totalorder %s31, 1
      %p241 = scmp.ne.s32.totalorder %s236, %s238
      %p242 = scmp.eq.s32.totalorder %s31, 0
      %p243 = por %p241, %p242
      %p244 = scmp.ne.s32.totalorder %s236, %s238
      %p245 = scmp.eq.s32.totalorder %s36, 1
      %p246 = por %p244, %p245
      %p247 = scmp.ne.s32.totalorder %s238, %s239
      %p248 = scmp.eq.s32.totalorder %s36, 0
      %p249 = por %p247, %p248
      %p250 = scmp.ne.s32.totalorder %s238, %s239
      %p251 = scmp.eq.s32.totalorder %s37, 1
      %p252 = por %p250, %p251
      %p254 = scmp.ne.s32.totalorder %s239, %s253
      %p255 = scmp.eq.s32.totalorder %s37, 0
      %p256 = por %p254, %p255
      %s257 = ssub.s32 %s38, %s50
      %s258 = ssub.s32 %s39, %s46
      %s259 = sor.u32 %s257, %s258
      %p260 = scmp.eq.s32.totalorder %s259, 0
      %s262 = sadd.s32 %s261, 1
      %s263 = scalar_select %p260, %s261, %s262
      %p266 = pneg %p260
      %p267 = scmp.eq.s32.totalorder %s31, 1
      %p268 = por %p266, %p267
      %p269 = scmp.ne.s32.totalorder %s261, %s264
      %p270 = scmp.eq.s32.totalorder %s31, 0
      %p271 = por %p269, %p270
      %p272 = scmp.ne.s32.totalorder %s261, %s264
      %p273 = scmp.eq.s32.totalorder %s36, 1
      %p274 = por %p272, %p273
      %p275 = scmp.ne.s32.totalorder %s264, %s265
      %p276 = scmp.eq.s32.totalorder %s36, 0
      %p277 = por %p275, %p276
      %p278 = scmp.ne.s32.totalorder %s264, %s265
      %p279 = scmp.eq.s32.totalorder %s37, 1
      %p280 = por %p278, %p279
      %p282 = scmp.ne.s32.totalorder %s265, %s281
      %p283 = scmp.eq.s32.totalorder %s37, 0
      %p284 = por %p282, %p283
      %s285 = ssub.s32 %s38, %s50
      %s286 = ssub.s32 %s39, %s46
      %s287 = sor.u32 %s285, %s286
      %p288 = scmp.eq.s32.totalorder %s287, 0
      %s290 = sadd.s32 %s289, 1
      %s291 = scalar_select %p288, %s289, %s290
      %p294 = pneg %p288
      %p295 = scmp.eq.s32.totalorder %s31, 1
      %p296 = por %p294, %p295
      %p297 = scmp.ne.s32.totalorder %s289, %s292
      %p298 = scmp.eq.s32.totalorder %s31, 0
      %p299 = por %p297, %p298
      %p300 = scmp.ne.s32.totalorder %s289, %s292
      %p301 = scmp.eq.s32.totalorder %s36, 1
      %p302 = por %p300, %p301
      %p303 = scmp.ne.s32.totalorder %s292, %s293
      %p304 = scmp.eq.s32.totalorder %s36, 0
      %p305 = por %p303, %p304
      %p306 = scmp.ne.s32.totalorder %s292, %s293
      %p307 = scmp.eq.s32.totalorder %s37, 1
      %p308 = por %p306, %p307
      %p310 = scmp.ne.s32.totalorder %s293, %s309
      %p311 = scmp.eq.s32.totalorder %s37, 0
      %p312 = por %p310, %p311
      %s313 = ssub.s32 %s38, %s50
      %s314 = ssub.s32 %s39, %s46
      %s315 = sor.u32 %s313, %s314
      %p316 = scmp.eq.s32.totalorder %s315, 0
      %s318 = sadd.s32 %s317, 1
      %s319 = scalar_select %p316, %s317, %s318
      %p322 = pneg %p316
      %p323 = scmp.eq.s32.totalorder %s31, 1
      %p324 = por %p322, %p323
      %p325 = scmp.ne.s32.totalorder %s317, %s320
      %p326 = scmp.eq.s32.totalorder %s31, 0
      %p327 = por %p325, %p326
      %p328 = scmp.ne.s32.totalorder %s317, %s320
      %p329 = scmp.eq.s32.totalorder %s36, 1
      %p330 = por %p328, %p329
      %p331 = scmp.ne.s32.totalorder %s320, %s321
      %p332 = scmp.eq.s32.totalorder %s36, 0
      %p333 = por %p331, %p332
      %p334 = scmp.ne.s32.totalorder %s320, %s321
      %p335 = scmp.eq.s32.totalorder %s37, 1
      %p336 = por %p334, %p335
      %p338 = scmp.ne.s32.totalorder %s321, %s337
      %p339 = scmp.eq.s32.totalorder %s37, 0
      %p340 = por %p338, %p339
      %p341 = scmp.le.s32.totalorder 1, %s31
      %p342 = scmp.lt.s32.totalorder %s31, 3
      %p343 = pnand %p341, %p342
      %p344 = pneg %p343
      // Predicated region
      $region9: #{tpu_custom_call.1} parent=5 // pred_check
        _
      $region10: #{tpu_custom_call.1} parent=5 // pred_check_branch
        %346 = sbr.rel (%p343) target = $region12
      $region11: #{tpu_custom_call.1} parent=5 // pred_region
        %s347 = ssub.s32 %s31, 1
        // Predicated region
        $region13: #{tpu_custom_call.1} parent=11 // pred_check
          %p348 = pneg %p144
        $region14: #{tpu_custom_call.1} parent=11 // pred_check_branch
          %350 = sbr.rel (%p348) target = $region16
        $region15: #{tpu_custom_call.1} parent=11 // pred_region
          %s352 = ssub.s32 256, 256
          %353 = vsyncadd [#allocation6], %s352
          %s354 = sshll.u32 [#allocation7], 4
          %s355 = int_to_ptr.vmem [resolvable:$true] %s354
          %360 = dma.hbm_to_vmem [thread:$0]  %s3, 256, %s355, [#allocation6], 64, 64, 4
        $region16: #{tpu_custom_call.1} parent=11 // pred_fallthru
          _
        // Predicated region
        $region17: #{tpu_custom_call.1} parent=11 // pred_check
          %p361 = pneg %p165
        $region18: #{tpu_custom_call.1} parent=11 // pred_check_branch
          %363 = sbr.rel (%p361) target = $region20
        $region19: #{tpu_custom_call.1} parent=11 // pred_region
          %s365 = ssub.s32 256, 256
          %366 = vsyncadd [#allocation9], %s365
          %s367 = sshll.u32 [#allocation8], 4
          %s368 = int_to_ptr.vmem [resolvable:$true] %s367
          %373 = dma.hbm_to_vmem [thread:$0]  %s4, 256, %s368, [#allocation9], 64, 64, 4
        $region20: #{tpu_custom_call.1} parent=11 // pred_fallthru
          _
        // Predicated region
        $region21: #{tpu_custom_call.1} parent=11 // pred_check
          %p374 = pneg %p186
        $region22: #{tpu_custom_call.1} parent=11 // pred_check_branch
          %376 = sbr.rel (%p374) target = $region24
        $region23: #{tpu_custom_call.1} parent=11 // pred_region
          _
        $region24: #{tpu_custom_call.1} parent=11 // pred_fallthru
          _
        // Predicated region
        $region25: #{tpu_custom_call.1} parent=11 // pred_check
          %p377 = pneg %p207
        $region26: #{tpu_custom_call.1} parent=11 // pred_check_branch
          %379 = sbr.rel (%p377) target = $region28
        $region27: #{tpu_custom_call.1} parent=11 // pred_region
          _
        $region28: #{tpu_custom_call.1} parent=11 // pred_fallthru
          _
        // Predicated region
        $region29: #{tpu_custom_call.1} parent=11 // pred_check
          %p380 = pneg %p228
        $region30: #{tpu_custom_call.1} parent=11 // pred_check_branch
          %382 = sbr.rel (%p380) target = $region32
        $region31: #{tpu_custom_call.1} parent=11 // pred_region
          _
        $region32: #{tpu_custom_call.1} parent=11 // pred_fallthru
          _
        // Predicated region
        $region33: #{tpu_custom_call.1} parent=11 // pred_check
          %p383 = pneg %p249
        $region34: #{tpu_custom_call.1} parent=11 // pred_check_branch
          %385 = sbr.rel (%p383) target = $region36
        $region35: #{tpu_custom_call.1} parent=11 // pred_region
          _
        $region36: #{tpu_custom_call.1} parent=11 // pred_fallthru
          _
      $region12: #{tpu_custom_call.1} parent=5 // pred_fallthru
        _
      %p386 = scmp.lt.s32.totalorder %s31, 2
      // Predicated region
      $region37: #{tpu_custom_call.1} parent=5 // pred_check
        %p387 = pneg %p386
      $region38: #{tpu_custom_call.1} parent=5 // pred_check_branch
        %389 = sbr.rel (%p387) target = $region40
      $region39: #{tpu_custom_call.1} parent=5 // pred_region
        // Predicated region
        $region41: #{tpu_custom_call.1} parent=39 // pred_check
          %p390 = pneg %p65
        $region42: #{tpu_custom_call.1} parent=39 // pred_check_branch
          %392 = sbr.rel (%p390) target = $region44
        $region43: #{tpu_custom_call.1} parent=39 // pred_region
          %s393 = sand.u32 %s55, 1
          %s394 = scalar_lea.sflag [#allocation3], %s393
          %s395 = sand.u32 %s55, 1
          %s396 = smul.addr %s395, 8
          %s397 = scalar_lea.vmem [#allocation2], %s396
          %s399 = ssub.s32 128, 128
          %400 = vsyncadd %s394, %s399
          %s401 = sadd.s32 %s39, %s38
          %s402 = smul.addr %s401, 128
          %s403 = scalar_lea.hbm %s0, %s402
          %s405 = sshll.u32 %s397, 4
          %s406 = int_to_ptr.vmem [resolvable:$true] %s405
          %408 = dma.hbm_to_vmem [thread:$0]  %s403, 128, %s406, %s394
        $region44: #{tpu_custom_call.1} parent=39 // pred_fallthru
          _
        // Predicated region
        $region45: #{tpu_custom_call.1} parent=39 // pred_check
          %p409 = pneg %p91
        $region46: #{tpu_custom_call.1} parent=39 // pred_check_branch
          %411 = sbr.rel (%p409) target = $region48
        $region47: #{tpu_custom_call.1} parent=39 // pred_region
          %p412 = scmp.lt.s32.totalorder %s38, 1
          %s413 = scalar_select %p412, %s38, 1
          %s414 = scalar_lea.vmem %s1, %s413
        $region48: #{tpu_custom_call.1} parent=39 // pred_fallthru
          _
        // Predicated region
        $region49: #{tpu_custom_call.1} parent=39 // pred_check
          %p415 = pneg %p117
        $region50: #{tpu_custom_call.1} parent=39 // pred_check_branch
          %417 = sbr.rel (%p415) target = $region52
        $region51: #{tpu_custom_call.1} parent=39 // pred_region
          %s418 = sand.u32 %s31, 1
          %s419 = scalar_lea.sflag [#allocation6], %s418
          %s420 = sand.u32 %s107, 1
          %s421 = scalar_lea.vmem [#allocation5], %s420
          %s423 = ssub.s32 16, 16
          %424 = vsyncadd %s419, %s423
          %s425 = smul.addr %s38, 16
          %s426 = scalar_lea.hbm %s2, %s425
          %s428 = sshll.u32 %s421, 4
          %s429 = int_to_ptr.vmem [resolvable:$true] %s428
          %431 = dma.hbm_to_vmem [thread:$0]  %s426, 16, %s429, %s419
        $region52: #{tpu_custom_call.1} parent=39 // pred_fallthru
          _
      $region40: #{tpu_custom_call.1} parent=5 // pred_fallthru
        _
      %p432 = scmp.le.s32.totalorder 1, %s31
      %p433 = scmp.lt.s32.totalorder %s31, 3
      %p434 = pnand %p432, %p433
      %p435 = pneg %p434
      // Predicated region
      $region53: #{tpu_custom_call.1} parent=5 // pred_check
        _
      $region54: #{tpu_custom_call.1} parent=5 // pred_check_branch
        %437 = sbr.rel (%p434) target = $region56
      $region55: #{tpu_custom_call.1} parent=5 // pred_region
        %s438 = ssub.s32 %s31, 1
        %s439 = sand.u32 %s58, 1
        %s440 = scalar_lea.sflag [#allocation3], %s439
        %s441 = sand.u32 %s58, 1
        %s442 = smul.addr %s441, 8
        %s443 = scalar_lea.vmem [#allocation2], %s442
        // Predicated region
        $region57: #{tpu_custom_call.1} parent=55 // pred_check
          %p444 = pneg %p71
        $region58: #{tpu_custom_call.1} parent=55 // pred_check_branch
          %446 = sbr.rel (%p444) target = $region60
        $region59: #{tpu_custom_call.1} parent=55 // pred_region
          %447 = dma.done %s440, 128
        $region60: #{tpu_custom_call.1} parent=55 // pred_fallthru
          _
        %s448 = sand.u32 %s36, 1
        %s449 = scalar_lea.sflag [#allocation6], %s448
        %s450 = sand.u32 %s110, 1
        %s451 = scalar_lea.vmem [#allocation5], %s450
        // Predicated region
        $region61: #{tpu_custom_call.1} parent=55 // pred_check
          %p452 = pneg %p123
        $region62: #{tpu_custom_call.1} parent=55 // pred_check_branch
          %454 = sbr.rel (%p452) target = $region64
        $region63: #{tpu_custom_call.1} parent=55 // pred_region
          %455 = dma.done %s449, 16
        $region64: #{tpu_custom_call.1} parent=55 // pred_fallthru
          _
        // Predicated region
        $region65: #{tpu_custom_call.1} parent=55 // pred_check
          %p456 = pneg %p144
        $region66: #{tpu_custom_call.1} parent=55 // pred_check_branch
          %458 = sbr.rel (%p456) target = $region68
        $region67: #{tpu_custom_call.1} parent=55 // pred_region
          %459 = dma.done [#allocation6], 256
        $region68: #{tpu_custom_call.1} parent=55 // pred_fallthru
          _
        // Predicated region
        $region69: #{tpu_custom_call.1} parent=55 // pred_check
          %p460 = pneg %p165
        $region70: #{tpu_custom_call.1} parent=55 // pred_check_branch
          %462 = sbr.rel (%p460) target = $region72
        $region71: #{tpu_custom_call.1} parent=55 // pred_region
          %463 = dma.done [#allocation9], 256
        $region72: #{tpu_custom_call.1} parent=55 // pred_fallthru
          _
        %s464 = sand.u32 %s58, 1
        %s465 = scalar_lea.sflag [#allocation3], %s464
        %s466 = sand.u32 %s58, 1
        %s467 = smul.addr %s466, 8
        %s468 = scalar_lea.vmem [#allocation2], %s467
        %p469 = pneg %p71
        %p470 = pneg %p68
        %p471 = scmp.lt.s32.totalorder %s40, 1
        %s472 = scalar_select %p471, %s40, 1
        %s473 = scalar_lea.vmem %s1, %s472
        %p474 = pneg %p97
        %p475 = pneg %p94
        %s476 = sand.u32 %s36, 1
        %s477 = scalar_lea.sflag [#allocation6], %s476
        %s478 = sand.u32 %s110, 1
        %s479 = scalar_lea.vmem [#allocation5], %s478
        %p480 = pneg %p123
        %p481 = pneg %p120
        %p482 = pneg %p144
        %p483 = pneg %p141
        %p484 = pneg %p165
        %p485 = pneg %p162
        %p486 = pneg %p186
        %p487 = pneg %p183
        %p488 = pneg %p207
        %p489 = pneg %p204
        %p490 = pneg %p228
        %p491 = pneg %p225
        %p492 = pneg %p249
        %p493 = pneg %p246
        %p494 = pneg %p277
        %p495 = pneg %p274
        %s496 = sand.u32 %s264, 1
        %s497 = scalar_lea.sflag [#allocation4], %s496
        %s498 = sand.u32 %s264, 1
        %s499 = smul.addr %s498, 4
        %s500 = scalar_lea.vmem [#allocation10], %s499
        %p501 = pneg %p305
        %p502 = pneg %p302
        %s503 = sand.u32 %s36, 1
        %s504 = scalar_lea.sflag [#allocation12], %s503
        %s505 = sand.u32 %s292, 1
        %s506 = smul.addr %s505, 4
        %s507 = scalar_lea.vmem [#allocation11], %s506
        %p508 = pneg %p333
        %p509 = pneg %p330
        %s510 = sand.u32 %s36, 1
        %s511 = scalar_lea.sflag [#allocation12], %s510
        %s512 = sand.u32 %s320, 1
        %s513 = smul.addr %s512, 4
        %s514 = scalar_lea.vmem [#allocation13], %s513
        %p515 = scmp.lt.s32.totalorder %s40, 1
        %s516 = scalar_select %p515, %s40, 1
        %s517 = scalar_lea.vmem %s1, %s516
        %v519 = vld [vmem:[%s443] sm:$0xff]
        %vm520 = vcmask 261120
        %v521 = vsel %vm520, %v519, 0.0
        %522 = vadd.xlane.f32.xlu0 %v521
        %v523 = vpop.xlane.xlu0 %522
        %v524 = vrcp.pop 32.0
        %v525 = vmul.f32 %v523, %v524
        %v526 = vsub.f32 %v519, %v525
        %v527 = vmul.f32 %v526, %v526
        %v528 = vsel %vm520, %v527, 0.0
        %529 = vadd.xlane.f32.xlu0 %v528
        %v530 = vpop.xlane.xlu0 %529
        %v531 = vmul.f32 %v530, %v524
        %v532 = vadd.f32 %v531, 1e-06
        %v533 = vrsqrt.pop %v532
        %v534 = vmul.f32 %v526, %v533
        %v535 = vld [vmem:[%s451] sm:$0x1]
        %v536 = vadd.f32 %v535, 1.0
        %v538 = vlaneseq
        %v539 = vshrl.u32 %v538, 7
        %v540 = vsub.s32 0, %v539
        %v541 = vrot.slane %v536, %v540
        %v543 = vmul.f32 %v534, %v541
        %v544 = vld [vmem:[%s517] sm:$0x1]
        %v546 = vlaneseq
        %v547 = vshrl.u32 %v546, 7
        %v548 = vsub.s32 0, %v547
        %v549 = vrot.slane %v544, %v548
        %v551 = vadd.f32 %v543, %v549
        %v552 = vpack.c.bf16 %v551, %v551
        %v553 = vld [vmem:[#allocation7] sm:$0xf]
        %v554 = vld [vmem:[#allocation7 + $0x4] sm:$0xf]
        %v555 = vld [vmem:[#allocation7 + $0x8] sm:$0xf]
        %v556 = vld [vmem:[#allocation7 + $0xc] sm:$0xf]
        %v557 = vld [vmem:[%s6] sm:$0x1]
        %v559 = vlaneseq
        %v560 = vshrl.u32 %v559, 7
        %v561 = vsub.s32 0, %v560
        %v562 = vrot.slane %v557, %v561
        %v568 = vunpack.c.l.b16 %v553
        %v569 = vunpack.c.l.b16 %v554
        %v570 = vunpack.c.l.b16 %v555
        %v571 = vunpack.c.l.b16 %v556
        %v572 = vpack.c.b16 %v569, %v568
        %v573 = vpack.c.b16 %v571, %v570
        %v577 = vsel %vm520, %v552, 0
        %579 = vmatprep.subr.bf16.mxu0 0
        %580 = vmatpush1.bf16.msra.mxu0 %v572
        %581 = vmatprep.subr.bf16.mxu0 0
        %582 = vmatpush1.bf16.msra.mxu0 %v573
        %583 = vmatprep.subr.bf16.mxu0 0
        %584 = vmatpush1.bf16.msra.mxu0 0
        %585 = vmatprep.subr.bf16.mxu0 0
        %586 = vmatpush1.bf16.msra.mxu0 0
        %587 = vmatprep.subr.bf16.mxu0 0
        %588 = vmatpush1.bf16.msra.mxu0 0
        %589 = vmatprep.subr.bf16.mxu0 0
        %590 = vmatpush1.bf16.msra.mxu0 0
        %591 = vmatprep.subr.bf16.mxu0 0
        %592 = vmatpush1.bf16.msra.mxu0 0
        %593 = vmatprep.subr.bf16.mxu0 0
        %594 = vmatpush1.bf16.msra.mxu0 0
        %595 = vmatprep.subr.bf16.mxu0 0
        %596 = vmatpush1.bf16.msra.mxu0 0
        %597 = vmatprep.subr.bf16.mxu0 0
        %598 = vmatpush1.bf16.msra.mxu0 0
        %599 = vmatprep.subr.bf16.mxu0 0
        %600 = vmatpush1.bf16.msra.mxu0 0
        %601 = vmatprep.subr.bf16.mxu0 0
        %602 = vmatpush1.bf16.msra.mxu0 0
        %603 = vmatprep.subr.bf16.mxu0 0
        %604 = vmatpush1.bf16.msra.mxu0 0
        %605 = vmatprep.subr.bf16.mxu0 0
        %606 = vmatpush1.bf16.msra.mxu0 0
        %607 = vmatprep.subr.bf16.mxu0 0
        %608 = vmatpush1.bf16.msra.mxu0 0
        %609 = vmatprep.subr.bf16.mxu0 0
        %610 = vmatpush1.bf16.msra.mxu0 0
        %611 = vmatprep.mubr.bf16.mxu0 0
        %612 = vmatmul.mubr.bf16.gmra.mrb[0].mxu0 %v577
        %v613 = vpop.f32.mrb[0].mxu0
        %v614 = vadd.f32 %v562, %v613
        %v615 = vpop.f32.mrb[0].mxu0
        %v616 = vpop.f32.mrb[0].mxu0
        %v617 = vpop.f32.mrb[0].mxu0
        %618 = vdwg.mxu0
        %v619 = vpack.c.bf16 %v614, %v614
        %vm620 = vcmask 257024
        %621 = vst.msk [vmem:[%s500] sm:$0xf] %vm620, %v619
        %v622 = vld [vmem:[#allocation8] sm:$0xf]
        %v623 = vld [vmem:[#allocation8 + $0x4] sm:$0xf]
        %v624 = vld [vmem:[#allocation8 + $0x8] sm:$0xf]
        %v625 = vld [vmem:[#allocation8 + $0xc] sm:$0xf]
        %v626 = vld [vmem:[%s7] sm:$0x1]
        %v628 = vlaneseq
        %v629 = vshrl.u32 %v628, 7
        %v630 = vsub.s32 0, %v629
        %v631 = vrot.slane %v626, %v630
        %v637 = vunpack.c.l.b16 %v622
        %v638 = vunpack.c.l.b16 %v623
        %v639 = vunpack.c.l.b16 %v624
        %v640 = vunpack.c.l.b16 %v625
        %v641 = vpack.c.b16 %v638, %v637
        %v642 = vpack.c.b16 %v640, %v639
        %645 = vmatprep.subr.bf16.mxu0 0
        %646 = vmatpush1.bf16.msra.mxu0 %v641
        %647 = vmatprep.subr.bf16.mxu0 0
        %648 = vmatpush1.bf16.msra.mxu0 %v642
        %649 = vmatprep.subr.bf16.mxu0 0
        %650 = vmatpush1.bf16.msra.mxu0 0
        %651 = vmatprep.subr.bf16.mxu0 0
        %652 = vmatpush1.bf16.msra.mxu0 0
        %653 = vmatprep.subr.bf16.mxu0 0
        %654 = vmatpush1.bf16.msra.mxu0 0
        %655 = vmatprep.subr.bf16.mxu0 0
        %656 = vmatpush1.bf16.msra.mxu0 0
        %657 = vmatprep.subr.bf16.mxu0 0
        %658 = vmatpush1.bf16.msra.mxu0 0
        %659 = vmatprep.subr.bf16.mxu0 0
        %660 = vmatpush1.bf16.msra.mxu0 0
        %661 = vmatprep.subr.bf16.mxu0 0
        %662 = vmatpush1.bf16.msra.mxu0 0
        %663 = vmatprep.subr.bf16.mxu0 0
        %664 = vmatpush1.bf16.msra.mxu0 0
        %665 = vmatprep.subr.bf16.mxu0 0
        %666 = vmatpush1.bf16.msra.mxu0 0
        %667 = vmatprep.subr.bf16.mxu0 0
        %668 = vmatpush1.bf16.msra.mxu0 0
        %669 = vmatprep.subr.bf16.mxu0 0
        %670 = vmatpush1.bf16.msra.mxu0 0
        %671 = vmatprep.subr.bf16.mxu0 0
        %672 = vmatpush1.bf16.msra.mxu0 0
        %673 = vmatprep.subr.bf16.mxu0 0
        %674 = vmatpush1.bf16.msra.mxu0 0
        %675 = vmatprep.subr.bf16.mxu0 0
        %676 = vmatpush1.bf16.msra.mxu0 0
        %677 = vmatprep.mubr.bf16.mxu0 0
        %678 = vmatmul.mubr.bf16.gmra.mrb[0].mxu0 %v577
        %v679 = vpop.f32.mrb[0].mxu0
        %v680 = vadd.f32 %v631, %v679
        %v681 = vpop.f32.mrb[0].mxu0
        %v682 = vpop.f32.mrb[0].mxu0
        %v683 = vpop.f32.mrb[0].mxu0
        %684 = vdwg.mxu0
        %v685 = vpack.c.bf16 %v680, %v680
        %686 = vst.msk [vmem:[%s507] sm:$0xf] %vm620, %v685
        %v687 = vld [vmem:[%s5] sm:$0xf]
        %v688 = vld [vmem:[%s5 + $0x4] sm:$0xf]
        %v689 = vld [vmem:[%s5 + $0x8] sm:$0xf]
        %v690 = vld [vmem:[%s5 + $0xc] sm:$0xf]
        %v691 = vld [vmem:[%s8] sm:$0x1]
        %v693 = vlaneseq
        %v694 = vshrl.u32 %v693, 7
        %v695 = vsub.s32 0, %v694
        %v696 = vrot.slane %v691, %v695
        %v702 = vunpack.c.l.b16 %v687
        %v703 = vunpack.c.l.b16 %v688
        %v704 = vunpack.c.l.b16 %v689
        %v705 = vunpack.c.l.b16 %v690
        %v706 = vpack.c.b16 %v703, %v702
        %v707 = vpack.c.b16 %v705, %v704
        %710 = vmatprep.subr.bf16.mxu0 0
        %711 = vmatpush1.bf16.msra.mxu0 %v706
        %712 = vmatprep.subr.bf16.mxu0 0
        %713 = vmatpush1.bf16.msra.mxu0 %v707
        %714 = vmatprep.subr.bf16.mxu0 0
        %715 = vmatpush1.bf16.msra.mxu0 0
        %716 = vmatprep.subr.bf16.mxu0 0
        %717 = vmatpush1.bf16.msra.mxu0 0
        %718 = vmatprep.subr.bf16.mxu0 0
        %719 = vmatpush1.bf16.msra.mxu0 0
        %720 = vmatprep.subr.bf16.mxu0 0
        %721 = vmatpush1.bf16.msra.mxu0 0
        %722 = vmatprep.subr.bf16.mxu0 0
        %723 = vmatpush1.bf16.msra.mxu0 0
        %724 = vmatprep.subr.bf16.mxu0 0
        %725 = vmatpush1.bf16.msra.mxu0 0
        %726 = vmatprep.subr.bf16.mxu0 0
        %727 = vmatpush1.bf16.msra.mxu0 0
        %728 = vmatprep.subr.bf16.mxu0 0
        %729 = vmatpush1.bf16.msra.mxu0 0
        %730 = vmatprep.subr.bf16.mxu0 0
        %731 = vmatpush1.bf16.msra.mxu0 0
        %732 = vmatprep.subr.bf16.mxu0 0
        %733 = vmatpush1.bf16.msra.mxu0 0
        %734 = vmatprep.subr.bf16.mxu0 0
        %735 = vmatpush1.bf16.msra.mxu0 0
        %736 = vmatprep.subr.bf16.mxu0 0
        %737 = vmatpush1.bf16.msra.mxu0 0
        %738 = vmatprep.subr.bf16.mxu0 0
        %739 = vmatpush1.bf16.msra.mxu0 0
        %740 = vmatprep.subr.bf16.mxu0 0
        %741 = vmatpush1.bf16.msra.mxu0 0
        %742 = vmatprep.mubr.bf16.mxu0 0
        %743 = vmatmul.mubr.bf16.gmra.mrb[0].mxu0 %v577
        %v744 = vpop.f32.mrb[0].mxu0
        %v745 = vadd.f32 %v696, %v744
        %v746 = vpop.f32.mrb[0].mxu0
        %v747 = vpop.f32.mrb[0].mxu0
        %v748 = vpop.f32.mrb[0].mxu0
        %749 = vdwg.mxu0
        %v750 = vpack.c.bf16 %v745, %v745
        %751 = vst.msk [vmem:[%s514] sm:$0xf] %vm620, %v750
        %s752 = sand.u32 %s264, 1
        %s753 = scalar_lea.sflag [#allocation4], %s752
        %s754 = sand.u32 %s264, 1
        %s755 = smul.addr %s754, 4
        %s756 = scalar_lea.vmem [#allocation10], %s755
        %s757 = sand.u32 %s36, 1
        %s758 = scalar_lea.sflag [#allocation12], %s757
        %s759 = sand.u32 %s292, 1
        %s760 = smul.addr %s759, 4
        %s761 = scalar_lea.vmem [#allocation11], %s760
        %s762 = sand.u32 %s36, 1
        %s763 = scalar_lea.sflag [#allocation12], %s762
        %s764 = sand.u32 %s320, 1
        %s765 = smul.addr %s764, 4
        %s766 = scalar_lea.vmem [#allocation13], %s765
        // Predicated region
        $region73: #{tpu_custom_call.1} parent=55 // pred_check
          %p767 = pneg %p274
        $region74: #{tpu_custom_call.1} parent=55 // pred_check_branch
          %769 = sbr.rel (%p767) target = $region76
        $region75: #{tpu_custom_call.1} parent=55 // pred_region
          %s771 = ssub.s32 64, 64
          %772 = vsyncadd %s753, %s771
          %s773 = sadd.s32 %s41, %s40
          %s774 = smul.addr %s773, 64
          %s775 = scalar_lea.hbm %s9, %s774
          %s777 = sshll.u32 %s756, 4
          %s778 = int_to_ptr.vmem [resolvable:$true] %s777
          %780 = dma.vmem_to_hbm [thread:$0]  %s778, 64, %s775, %s753
        $region76: #{tpu_custom_call.1} parent=55 // pred_fallthru
          _
        // Predicated region
        $region77: #{tpu_custom_call.1} parent=55 // pred_check
          %p781 = pneg %p302
        $region78: #{tpu_custom_call.1} parent=55 // pred_check_branch
          %783 = sbr.rel (%p781) target = $region80
        $region79: #{tpu_custom_call.1} parent=55 // pred_region
          %s785 = ssub.s32 64, 64
          %786 = vsyncadd %s758, %s785
          %s787 = sadd.s32 %s41, %s40
          %s788 = smul.addr %s787, 64
          %s789 = scalar_lea.hbm %s10, %s788
          %s791 = sshll.u32 %s761, 4
          %s792 = int_to_ptr.vmem [resolvable:$true] %s791
          %794 = dma.vmem_to_hbm [thread:$0]  %s792, 64, %s789, %s758
        $region80: #{tpu_custom_call.1} parent=55 // pred_fallthru
          _
        // Predicated region
        $region81: #{tpu_custom_call.1} parent=55 // pred_check
          %p795 = pneg %p330
        $region82: #{tpu_custom_call.1} parent=55 // pred_check_branch
          %797 = sbr.rel (%p795) target = $region84
        $region83: #{tpu_custom_call.1} parent=55 // pred_region
          %s799 = ssub.s32 64, 64
          %800 = vsyncadd %s763, %s799
          %s801 = sadd.s32 %s41, %s40
          %s802 = smul.addr %s801, 64
          %s803 = scalar_lea.hbm %s11, %s802
          %s805 = sshll.u32 %s766, 4
          %s806 = int_to_ptr.vmem [resolvable:$true] %s805
          %808 = dma.vmem_to_hbm [thread:$0]  %s806, 64, %s803, %s763
        $region84: #{tpu_custom_call.1} parent=55 // pred_fallthru
          _
      $region56: #{tpu_custom_call.1} parent=5 // pred_fallthru
        _
      %p809 = scmp.le.s32.totalorder 2, %s31
      // Predicated region
      $region85: #{tpu_custom_call.1} parent=5 // pred_check
        %p810 = pneg %p809
      $region86: #{tpu_custom_call.1} parent=5 // pred_check_branch
        %812 = sbr.rel (%p810) target = $region88
      $region87: #{tpu_custom_call.1} parent=5 // pred_region
        %s813 = ssub.s32 %s31, 2
        // Predicated region
        $region89: #{tpu_custom_call.1} parent=87 // pred_check
          %p814 = pneg %p280
        $region90: #{tpu_custom_call.1} parent=87 // pred_check_branch
          %816 = sbr.rel (%p814) target = $region92
        $region91: #{tpu_custom_call.1} parent=87 // pred_region
          %s817 = sand.u32 %s265, 1
          %s818 = scalar_lea.sflag [#allocation4], %s817
          %s819 = sand.u32 %s265, 1
          %s820 = smul.addr %s819, 4
          %s821 = scalar_lea.vmem [#allocation10], %s820
          %822 = dma.done %s818, 64
        $region92: #{tpu_custom_call.1} parent=87 // pred_fallthru
          _
        // Predicated region
        $region93: #{tpu_custom_call.1} parent=87 // pred_check
          %p823 = pneg %p308
        $region94: #{tpu_custom_call.1} parent=87 // pred_check_branch
          %825 = sbr.rel (%p823) target = $region96
        $region95: #{tpu_custom_call.1} parent=87 // pred_region
          %s826 = sand.u32 %s37, 1
          %s827 = scalar_lea.sflag [#allocation12], %s826
          %s828 = sand.u32 %s293, 1
          %s829 = smul.addr %s828, 4
          %s830 = scalar_lea.vmem [#allocation11], %s829
          %831 = dma.done %s827, 64
        $region96: #{tpu_custom_call.1} parent=87 // pred_fallthru
          _
        // Predicated region
        $region97: #{tpu_custom_call.1} parent=87 // pred_check
          %p832 = pneg %p336
        $region98: #{tpu_custom_call.1} parent=87 // pred_check_branch
          %834 = sbr.rel (%p832) target = $region100
        $region99: #{tpu_custom_call.1} parent=87 // pred_region
          %s835 = sand.u32 %s37, 1
          %s836 = scalar_lea.sflag [#allocation12], %s835
          %s837 = sand.u32 %s321, 1
          %s838 = smul.addr %s837, 4
          %s839 = scalar_lea.vmem [#allocation13], %s838
          %840 = dma.done %s836, 64
        $region100: #{tpu_custom_call.1} parent=87 // pred_fallthru
          _
      $region88: #{tpu_custom_call.1} parent=5 // pred_fallthru
        _
    $region6: #{tpu_custom_call.1} parent=1 // loop_footer
      %s35 = sadd.s32 1, %s31
    $region7: #{tpu_custom_call.1} parent=1 // loop_footer_branch
      %30 = sbr.rel target = $region3
    $region8: #{tpu_custom_call.1} parent=1 // loop_exit
      _
    %841 = vsyncpa [#allocation3], 1
    %s842 = scalar_lea.sflag [#allocation3], 1
    %843 = vsyncpa %s842, 1
    %844 = vsyncpa [#allocation6], 1
    %s845 = scalar_lea.sflag [#allocation6], 1
    %846 = vsyncpa %s845, 1
    %847 = vsyncpa [#allocation9], 1
    %848 = vsyncpa [#allocation4], 1
    %s849 = scalar_lea.sflag [#allocation4], 1
    %850 = vsyncpa %s849, 1
    %851 = vsyncpa [#allocation12], 1
    %s852 = scalar_lea.sflag [#allocation12], 1
    %853 = vsyncpa %s852, 1

// kernel: tpu_custom_call.1
$region0: #{tpu_custom_call.1}
  #allocation0 [shape = 'u32[]', space=smem, size = 0x4, offset = 0x4, fixed_abs, tag = 'smem constant byte address 0x4 - core index']
  #allocation1 [shape = 'u32[144,128]{1,0:T(1,128)}', space=vmem, size = 0x12000, scoped, tag = 'internal scratch']
  %s0 = inlined_call_operand.hbm [shape: f32[2,8,32], index: 0, kind: input, shape index: {}]
  %s1 = inlined_call_operand.vmem [shape: f32[2,1,32], index: 1, kind: input, shape index: {}]
  %s2 = inlined_call_operand.hbm [shape: f32[2,1,32], index: 2, kind: input, shape index: {}]
  %s3 = inlined_call_operand.hbm [shape: bf16[32,32], index: 3, kind: input, shape index: {}]
  %s4 = inlined_call_operand.hbm [shape: bf16[32,32], index: 4, kind: input, shape index: {}]
  %s5 = inlined_call_operand.vmem [shape: bf16[32,32], index: 5, kind: input, shape index: {}]
  %s6 = inlined_call_operand.vmem [shape: f32[1,32], index: 6, kind: input, shape index: {}]
  %s7 = inlined_call_operand.vmem [shape: f32[1,32], index: 7, kind: input, shape index: {}]
  %s8 = inlined_call_operand.vmem [shape: f32[1,32], index: 8, kind: input, shape index: {}]
  %s9 = inlined_call_operand.hbm [shape: bf16[2,8,32], index: 9, kind: output, shape index: {0}]
  %s10 = inlined_call_operand.hbm [shape: bf16[2,8,32], index: 10, kind: output, shape index: {1}]
  %s11 = inlined_call_operand.hbm [shape: bf16[2,8,32], index: 11, kind: output, shape index: {2}]
  %12 = xla_tuple %s9, %s10, %s11
  %s13 = sld [smem:[#allocation0]]
  $region101: #{tpu_custom_call.1} parent=0
    _
  %s15 = ssub.s32 1, %s13
  %s16 = scalar_select 0, %s15, %s13
  $region1: #{tpu_custom_call.1} parent=0
    #allocation2 [shape = 'u8[8192]{0}', space=vmem, size = 0x2000, scoped, tag = 'input window, operand 0']
    #allocation3 [shape = 's32[2]{0}', space=sflag, size = 0x8, scoped, tag = 'scoped memory for tpu_custom_call.1']
    #allocation4 [shape = 's32[2]{0}', space=sflag, size = 0x8, scoped, tag = 'scoped memory for tpu_custom_call.1']
    #allocation5 [shape = 'u8[1024]{0}', space=vmem, size = 0x400, scoped, tag = 'input window, operand 2']
    #allocation6 [shape = 's32[2]{0}', space=sflag, size = 0x8, scoped, tag = 'scoped memory for tpu_custom_call.1']
    #allocation7 [shape = 'u8[8192]{0}', space=vmem, size = 0x2000, scoped, tag = 'input window, operand 3, single buffered']
    #allocation8 [shape = 'u8[8192]{0}', space=vmem, size = 0x2000, scoped, tag = 'input window, operand 4, single buffered']
    #allocation9 [shape = 's32[1]{0}', space=sflag, size = 0x4, scoped, tag = 'scoped memory for tpu_custom_call.1']
    #allocation10 [shape = 'u8[4096]{0}', space=vmem, size = 0x1000, scoped, tag = 'output window, operand 0']
    #allocation11 [shape = 'u8[4096]{0}', space=vmem, size = 0x1000, scoped, tag = 'output window, operand 1']
    #allocation12 [shape = 's32[2]{0}', space=sflag, size = 0x8, scoped, tag = 'scoped memory for tpu_custom_call.1']
    #allocation13 [shape = 'u8[4096]{0}', space=vmem, size = 0x1000, scoped, tag = 'output window, operand 2']
    %17 = vsyncpa [#allocation3], 0
    %s18 = scalar_lea.sflag [#allocation3], 1
    %19 = vsyncpa %s18, 0
    %20 = vsyncpa [#allocation6], 0
    %s21 = scalar_lea.sflag [#allocation6], 1
    %22 = vsyncpa %s21, 0
    %23 = vsyncpa [#allocation9], 0
    %24 = vsyncpa [#allocation4], 0
    %s25 = scalar_lea.sflag [#allocation4], 1
    %26 = vsyncpa %s25, 0
    %27 = vsyncpa [#allocation12], 0
    %s28 = scalar_lea.sflag [#allocation12], 1
    %29 = vsyncpa %s28, 0
    loop: start=0, step=1, limit=4
    $region2: #{tpu_custom_call.1} parent=1 // loop_pre_header
      _
    $region3: #{tpu_custom_call.1} parent=1 // loop_header
      %s31 = sphi 0, %s35
      %p32 = scmp.ge.s32.totalorder %s31, 4
      %s38 = sphi 0, %s50
      %s39 = sphi 0, %s46
      %s40 = sphi 0, %s38
      %s41 = sphi 0, %s39
      %s42 = sphi 0, %s40
      %s43 = sphi 0, %s41
      %s55 = sphi 0, %s57
      %s58 = sphi 0, %s55
      %s59 = sphi 0, %s58
      %s75 = sphi 0, %s59
      %s81 = sphi 0, %s83
      %s84 = sphi 0, %s81
      %s85 = sphi 0, %s84
      %s101 = sphi 0, %s85
      %s107 = sphi 0, %s109
      %s110 = sphi 0, %s107
      %s111 = sphi 0, %s110
      %s127 = sphi 0, %s111
      %s131 = sphi 0, %s131
      %s133 = sphi 0, %s131
      %s134 = sphi 0, %s133
      %s148 = sphi 0, %s134
      %s152 = sphi 0, %s152
      %s154 = sphi 0, %s152
      %s155 = sphi 0, %s154
      %s169 = sphi 0, %s155
      %s173 = sphi 0, %s173
      %s175 = sphi 0, %s173
      %s176 = sphi 0, %s175
      %s190 = sphi 0, %s176
      %s194 = sphi 0, %s194
      %s196 = sphi 0, %s194
      %s197 = sphi 0, %s196
      %s211 = sphi 0, %s197
      %s215 = sphi 0, %s215
      %s217 = sphi 0, %s215
      %s218 = sphi 0, %s217
      %s232 = sphi 0, %s218
      %s236 = sphi 0, %s236
      %s238 = sphi 0, %s236
      %s239 = sphi 0, %s238
      %s253 = sphi 0, %s239
      %s261 = sphi 0, %s263
      %s264 = sphi 0, %s261
      %s265 = sphi 0, %s264
      %s281 = sphi 0, %s265
      %s289 = sphi 0, %s291
      %s292 = sphi 0, %s289
      %s293 = sphi 0, %s292
      %s309 = sphi 0, %s293
      %s317 = sphi 0, %s319
      %s320 = sphi 0, %s317
      %s321 = sphi 0, %s320
      %s337 = sphi 0, %s321
    $region4: #{tpu_custom_call.1} parent=1 // loop_header_branch
      %34 = sbr.rel (%p32) target = $region8
    $region5: #{tpu_custom_call.1} parent=1 // loop_body
      %s36 = ssub.s32 %s31, 1
      %s37 = ssub.s32 %s31, 2
      %s44 = sadd.s32 1, %s39
      %p45 = scmp.ge.s32.totalorder %s44, 1
      %s46 = scalar_select %p45, 0, %s44
      %s47 = sadd.s32 1, %s38
      %s48 = scalar_select %p45, %s47, %s38
      %p49 = scmp.ge.s32.totalorder %s48, 2
      %s50 = scalar_select %p49, 0, %s48
      %s51 = ssub.s32 %s38, %s50
      %s52 = ssub.s32 %s39, %s46
      %s53 = sor.u32 %s51, %s52
      %p54 = scmp.eq.s32.totalorder %s53, 0
      %s56 = sadd.s32 %s55, 1
      %s57 = scalar_select %p54, %s55, %s56
      %p60 = pneg %p54
      %p61 = scmp.eq.s32.totalorder %s31, 1
      %p62 = por %p60, %p61
      %p63 = scmp.ne.s32.totalorder %s55, %s58
      %p64 = scmp.eq.s32.totalorder %s31, 0
      %p65 = por %p63, %p64
      %p66 = scmp.ne.s32.totalorder %s55, %s58
      %p67 = scmp.eq.s32.totalorder %s36, 1
      %p68 = por %p66, %p67
      %p69 = scmp.ne.s32.totalorder %s58, %s59
      %p70 = scmp.eq.s32.totalorder %s36, 0
      %p71 = por %p69, %p70
      %p72 = scmp.ne.s32.totalorder %s58, %s59
      %p73 = scmp.eq.s32.totalorder %s37, 1
      %p74 = por %p72, %p73
      %p76 = scmp.ne.s32.totalorder %s59, %s75
      %p77 = scmp.eq.s32.totalorder %s37, 0
      %p78 = por %p76, %p77
      %s79 = ssub.s32 %s38, %s50
      %p80 = scmp.eq.s32.totalorder %s79, 0
      %s82 = sadd.s32 %s81, 1
      %s83 = scalar_select %p80, %s81, %s82
      %p86 = pneg %p80
      %p87 = scmp.eq.s32.totalorder %s31, 1
      %p88 = por %p86, %p87
      %p89 = scmp.ne.s32.totalorder %s81, %s84
      %p90 = scmp.eq.s32.totalorder %s31, 0
      %p91 = por %p89, %p90
      %p92 = scmp.ne.s32.totalorder %s81, %s84
      %p93 = scmp.eq.s32.totalorder %s36, 1
      %p94 = por %p92, %p93
      %p95 = scmp.ne.s32.totalorder %s84, %s85
      %p96 = scmp.eq.s32.totalorder %s36, 0
      %p97 = por %p95, %p96
      %p98 = scmp.ne.s32.totalorder %s84, %s85
      %p99 = scmp.eq.s32.totalorder %s37, 1
      %p100 = por %p98, %p99
      %p102 = scmp.ne.s32.totalorder %s85, %s101
      %p103 = scmp.eq.s32.totalorder %s37, 0
      %p104 = por %p102, %p103
      %s105 = ssub.s32 %s38, %s50
      %p106 = scmp.eq.s32.totalorder %s105, 0
      %s108 = sadd.s32 %s107, 1
      %s109 = scalar_select %p106, %s107, %s108
      %p112 = pneg %p106
      %p113 = scmp.eq.s32.totalorder %s31, 1
      %p114 = por %p112, %p113
      %p115 = scmp.ne.s32.totalorder %s107, %s110
      %p116 = scmp.eq.s32.totalorder %s31, 0
      %p117 = por %p115, %p116
      %p118 = scmp.ne.s32.totalorder %s107, %s110
      %p119 = scmp.eq.s32.totalorder %s36, 1
      %p120 = por %p118, %p119
      %p121 = scmp.ne.s32.totalorder %s110, %s111
      %p122 = scmp.eq.s32.totalorder %s36, 0
      %p123 = por %p121, %p122
      %p124 = scmp.ne.s32.totalorder %s110, %s111
      %p125 = scmp.eq.s32.totalorder %s37, 1
      %p126 = por %p124, %p125
      %p128 = scmp.ne.s32.totalorder %s111, %s127
      %p129 = scmp.eq.s32.totalorder %s37, 0
      %p130 = por %p128, %p129
      %s132 = sadd.s32 %s131, 1
      %p135 = scmp.eq.s32.totalorder %s31, 1
      %p136 = scmp.ne.s32.totalorder %s131, %s133
      %p137 = scmp.eq.s32.totalorder %s31, 0
      %p138 = por %p136, %p137
      %p139 = scmp.ne.s32.totalorder %s131, %s133
      %p140 = scmp.eq.s32.totalorder %s36, 1
      %p141 = por %p139, %p140
      %p142 = scmp.ne.s32.totalorder %s133, %s134
      %p143 = scmp.eq.s32.totalorder %s36, 0
      %p144 = por %p142, %p143
      %p145 = scmp.ne.s32.totalorder %s133, %s134
      %p146 = scmp.eq.s32.totalorder %s37, 1
      %p147 = por %p145, %p146
      %p149 = scmp.ne.s32.totalorder %s134, %s148
      %p150 = scmp.eq.s32.totalorder %s37, 0
      %p151 = por %p149, %p150
      %s153 = sadd.s32 %s152, 1
      %p156 = scmp.eq.s32.totalorder %s31, 1
      %p157 = scmp.ne.s32.totalorder %s152, %s154
      %p158 = scmp.eq.s32.totalorder %s31, 0
      %p159 = por %p157, %p158
      %p160 = scmp.ne.s32.totalorder %s152, %s154
      %p161 = scmp.eq.s32.totalorder %s36, 1
      %p162 = por %p160, %p161
      %p163 = scmp.ne.s32.totalorder %s154, %s155
      %p164 = scmp.eq.s32.totalorder %s36, 0
      %p165 = por %p163, %p164
      %p166 = scmp.ne.s32.totalorder %s154, %s155
      %p167 = scmp.eq.s32.totalorder %s37, 1
      %p168 = por %p166, %p167
      %p170 = scmp.ne.s32.totalorder %s155, %s169
      %p171 = scmp.eq.s32.totalorder %s37, 0
      %p172 = por %p170, %p171
      %s174 = sadd.s32 %s173, 1
      %p177 = scmp.eq.s32.totalorder %s31, 1
      %p178 = scmp.ne.s32.totalorder %s173, %s175
      %p179 = scmp.eq.s32.totalorder %s31, 0
      %p180 = por %p178, %p179
      %p181 = scmp.ne.s32.totalorder %s173, %s175
      %p182 = scmp.eq.s32.totalorder %s36, 1
      %p183 = por %p181, %p182
      %p184 = scmp.ne.s32.totalorder %s175, %s176
      %p185 = scmp.eq.s32.totalorder %s36, 0
      %p186 = por %p184, %p185
      %p187 = scmp.ne.s32.totalorder %s175, %s176
      %p188 = scmp.eq.s32.totalorder %s37, 1
      %p189 = por %p187, %p188
      %p191 = scmp.ne.s32.totalorder %s176, %s190
      %p192 = scmp.eq.s32.totalorder %s37, 0
      %p193 = por %p191, %p192
      %s195 = sadd.s32 %s194, 1
      %p198 = scmp.eq.s32.totalorder %s31, 1
      %p199 = scmp.ne.s32.totalorder %s194, %s196
      %p200 = scmp.eq.s32.totalorder %s31, 0
      %p201 = por %p199, %p200
      %p202 = scmp.ne.s32.totalorder %s194, %s196
      %p203 = scmp.eq.s32.totalorder %s36, 1
      %p204 = por %p202, %p203
      %p205 = scmp.ne.s32.totalorder %s196, %s197
      %p206 = scmp.eq.s32.totalorder %s36, 0
      %p207 = por %p205, %p206
      %p208 = scmp.ne.s32.totalorder %s196, %s197
      %p209 = scmp.eq.s32.totalorder %s37, 1
      %p210 = por %p208, %p209
      %p212 = scmp.ne.s32.totalorder %s197, %s211
      %p213 = scmp.eq.s32.totalorder %s37, 0
      %p214 = por %p212, %p213
      %s216 = sadd.s32 %s215, 1
      %p219 = scmp.eq.s32.totalorder %s31, 1
      %p220 = scmp.ne.s32.totalorder %s215, %s217
      %p221 = scmp.eq.s32.totalorder %s31, 0
      %p222 = por %p220, %p221
      %p223 = scmp.ne.s32.totalorder %s215, %s217
      %p224 = scmp.eq.s32.totalorder %s36, 1
      %p225 = por %p223, %p224
      %p226 = scmp.ne.s32.totalorder %s217, %s218
      %p227 = scmp.eq.s32.totalorder %s36, 0
      %p228 = por %p226, %p227
      %p229 = scmp.ne.s32.totalorder %s217, %s218
      %p230 = scmp.eq.s32.totalorder %s37, 1
      %p231 = por %p229, %p230
      %p233 = scmp.ne.s32.totalorder %s218, %s232
      %p234 = scmp.eq.s32.totalorder %s37, 0
      %p235 = por %p233, %p234
      %s237 = sadd.s32 %s236, 1
      %p240 = scmp.eq.s32.totalorder %s31, 1
      %p241 = scmp.ne.s32.totalorder %s236, %s238
      %p242 = scmp.eq.s32.totalorder %s31, 0
      %p243 = por %p241, %p242
      %p244 = scmp.ne.s32.totalorder %s236, %s238
      %p245 = scmp.eq.s32.totalorder %s36, 1
      %p246 = por %p244, %p245
      %p247 = scmp.ne.s32.totalorder %s238, %s239
      %p248 = scmp.eq.s32.totalorder %s36, 0
      %p249 = por %p247, %p248
      %p250 = scmp.ne.s32.totalorder %s238, %s239
      %p251 = scmp.eq.s32.totalorder %s37, 1
      %p252 = por %p250, %p251
      %p254 = scmp.ne.s32.totalorder %s239, %s253
      %p255 = scmp.eq.s32.totalorder %s37, 0
      %p256 = por %p254, %p255
      %s257 = ssub.s32 %s38, %s50
      %s258 = ssub.s32 %s39, %s46
      %s259 = sor.u32 %s257, %s258
      %p260 = scmp.eq.s32.totalorder %s259, 0
      %s262 = sadd.s32 %s261, 1
      %s263 = scalar_select %p260, %s261, %s262
      %p266 = pneg %p260
      %p267 = scmp.eq.s32.totalorder %s31, 1
      %p268 = por %p266, %p267
      %p269 = scmp.ne.s32.totalorder %s261, %s264
      %p270 = scmp.eq.s32.totalorder %s31, 0
      %p271 = por %p269, %p270
      %p272 = scmp.ne.s32.totalorder %s261, %s264
      %p273 = scmp.eq.s32.totalorder %s36, 1
      %p274 = por %p272, %p273
      %p275 = scmp.ne.s32.totalorder %s264, %s265
      %p276 = scmp.eq.s32.totalorder %s36, 0
      %p277 = por %p275, %p276
      %p278 = scmp.ne.s32.totalorder %s264, %s265
      %p279 = scmp.eq.s32.totalorder %s37, 1
      %p280 = por %p278, %p279
      %p282 = scmp.ne.s32.totalorder %s265, %s281
      %p283 = scmp.eq.s32.totalorder %s37, 0
      %p284 = por %p282, %p283
      %s285 = ssub.s32 %s38, %s50
      %s286 = ssub.s32 %s39, %s46
      %s287 = sor.u32 %s285, %s286
      %p288 = scmp.eq.s32.totalorder %s287, 0
      %s290 = sadd.s32 %s289, 1
      %s291 = scalar_select %p288, %s289, %s290
      %p294 = pneg %p288
      %p295 = scmp.eq.s32.totalorder %s31, 1
      %p296 = por %p294, %p295
      %p297 = scmp.ne.s32.totalorder %s289, %s292
      %p298 = scmp.eq.s32.totalorder %s31, 0
      %p299 = por %p297, %p298
      %p300 = scmp.ne.s32.totalorder %s289, %s292
      %p301 = scmp.eq.s32.totalorder %s36, 1
      %p302 = por %p300, %p301
      %p303 = scmp.ne.s32.totalorder %s292, %s293
      %p304 = scmp.eq.s32.totalorder %s36, 0
      %p305 = por %p303, %p304
      %p306 = scmp.ne.s32.totalorder %s292, %s293
      %p307 = scmp.eq.s32.totalorder %s37, 1
      %p308 = por %p306, %p307
      %p310 = scmp.ne.s32.totalorder %s293, %s309
      %p311 = scmp.eq.s32.totalorder %s37, 0
      %p312 = por %p310, %p311
      %s313 = ssub.s32 %s38, %s50
      %s314 = ssub.s32 %s39, %s46
      %s315 = sor.u32 %s313, %s314
      %p316 = scmp.eq.s32.totalorder %s315, 0
      %s318 = sadd.s32 %s317, 1
      %s319 = scalar_select %p316, %s317, %s318
      %p322 = pneg %p316
      %p323 = scmp.eq.s32.totalorder %s31, 1
      %p324 = por %p322, %p323
      %p325 = scmp.ne.s32.totalorder %s317, %s320
      %p326 = scmp.eq.s32.totalorder %s31, 0
      %p327 = por %p325, %p326
      %p328 = scmp.ne.s32.totalorder %s317, %s320
      %p329 = scmp.eq.s32.totalorder %s36, 1
      %p330 = por %p328, %p329
      %p331 = scmp.ne.s32.totalorder %s320, %s321
      %p332 = scmp.eq.s32.totalorder %s36, 0
      %p333 = por %p331, %p332
      %p334 = scmp.ne.s32.totalorder %s320, %s321
      %p335 = scmp.eq.s32.totalorder %s37, 1
      %p336 = por %p334, %p335
      %p338 = scmp.ne.s32.totalorder %s321, %s337
      %p339 = scmp.eq.s32.totalorder %s37, 0
      %p340 = por %p338, %p339
      %p341 = scmp.le.s32.totalorder 1, %s31
      %p342 = scmp.lt.s32.totalorder %s31, 3
      %p343 = pnand %p341, %p342
      %p344 = pneg %p343
      // Predicated region
      $region9: #{tpu_custom_call.1} parent=5 // pred_check
        _
      $region10: #{tpu_custom_call.1} parent=5 // pred_check_branch
        %346 = sbr.rel (%p343) target = $region12
      $region11: #{tpu_custom_call.1} parent=5 // pred_region
        %s347 = ssub.s32 %s31, 1
        // Predicated region
        $region13: #{tpu_custom_call.1} parent=11 // pred_check
          %p348 = pneg %p144
        $region14: #{tpu_custom_call.1} parent=11 // pred_check_branch
          %350 = sbr.rel (%p348) target = $region16
        $region15: #{tpu_custom_call.1} parent=11 // pred_region
          %s352 = ssub.s32 256, 256
          %353 = vsyncadd [#allocation6], %s352
          %s354 = sshll.u32 [#allocation7], 4
          %s355 = int_to_ptr.vmem [resolvable:$true] %s354
          %360 = dma.hbm_to_vmem [thread:$0]  %s3, 256, %s355, [#allocation6], 64, 64, 4
        $region16: #{tpu_custom_call.1} parent=11 // pred_fallthru
          _
        // Predicated region
        $region17: #{tpu_custom_call.1} parent=11 // pred_check
          %p361 = pneg %p165
        $region18: #{tpu_custom_call.1} parent=11 // pred_check_branch
          %363 = sbr.rel (%p361) target = $region20
        $region19: #{tpu_custom_call.1} parent=11 // pred_region
          %s365 = ssub.s32 256, 256
          %366 = vsyncadd [#allocation9], %s365
          %s367 = sshll.u32 [#allocation8], 4
          %s368 = int_to_ptr.vmem [resolvable:$true] %s367
          %373 = dma.hbm_to_vmem [thread:$0]  %s4, 256, %s368, [#allocation9], 64, 64, 4
        $region20: #{tpu_custom_call.1} parent=11 // pred_fallthru
          _
        // Predicated region
        $region21: #{tpu_custom_call.1} parent=11 // pred_check
          %p374 = pneg %p186
        $region22: #{tpu_custom_call.1} parent=11 // pred_check_branch
          %376 = sbr.rel (%p374) target = $region24
        $region23: #{tpu_custom_call.1} parent=11 // pred_region
          _
        $region24: #{tpu_custom_call.1} parent=11 // pred_fallthru
          _
        // Predicated region
        $region25: #{tpu_custom_call.1} parent=11 // pred_check
          %p377 = pneg %p207
        $region26: #{tpu_custom_call.1} parent=11 // pred_check_branch
          %379 = sbr.rel (%p377) target = $region28
        $region27: #{tpu_custom_call.1} parent=11 // pred_region
          _
        $region28: #{tpu_custom_call.1} parent=11 // pred_fallthru
          _
        // Predicated region
        $region29: #{tpu_custom_call.1} parent=11 // pred_check
          %p380 = pneg %p228
        $region30: #{tpu_custom_call.1} parent=11 // pred_check_branch
          %382 = sbr.rel (%p380) target = $region32
        $region31: #{tpu_custom_call.1} parent=11 // pred_region
          _
        $region32: #{tpu_custom_call.1} parent=11 // pred_fallthru
          _
        // Predicated region
        $region33: #{tpu_custom_call.1} parent=11 // pred_check
          %p383 = pneg %p249
        $region34: #{tpu_custom_call.1} parent=11 // pred_check_branch
          %385 = sbr.rel (%p383) target = $region36
        $region35: #{tpu_custom_call.1} parent=11 // pred_region
          _
        $region36: #{tpu_custom_call.1} parent=11 // pred_fallthru
          _
      $region12: #{tpu_custom_call.1} parent=5 // pred_fallthru
        _
      %p386 = scmp.lt.s32.totalorder %s31, 2
      // Predicated region
      $region37: #{tpu_custom_call.1} parent=5 // pred_check
        %p387 = pneg %p386
      $region38: #{tpu_custom_call.1} parent=5 // pred_check_branch
        %389 = sbr.rel (%p387) target = $region40
      $region39: #{tpu_custom_call.1} parent=5 // pred_region
        // Predicated region
        $region41: #{tpu_custom_call.1} parent=39 // pred_check
          %p390 = pneg %p65
        $region42: #{tpu_custom_call.1} parent=39 // pred_check_branch
          %392 = sbr.rel (%p390) target = $region44
        $region43: #{tpu_custom_call.1} parent=39 // pred_region
          %s393 = sand.u32 %s55, 1
          %s394 = scalar_lea.sflag [#allocation3], %s393
          %s395 = sand.u32 %s55, 1
          %s396 = smul.addr %s395, 8
          %s397 = scalar_lea.vmem [#allocation2], %s396
          %s399 = ssub.s32 128, 128
          %400 = vsyncadd %s394, %s399
          %s401 = sadd.s32 %s39, %s38
          %s402 = smul.addr %s401, 128
          %s403 = scalar_lea.hbm %s0, %s402
          %s405 = sshll.u32 %s397, 4
          %s406 = int_to_ptr.vmem [resolvable:$true] %s405
          %408 = dma.hbm_to_vmem [thread:$0]  %s403, 128, %s406, %s394
        $region44: #{tpu_custom_call.1} parent=39 // pred_fallthru
          _
        // Predicated region
        $region45: #{tpu_custom_call.1} parent=39 // pred_check
          %p409 = pneg %p91
        $region46: #{tpu_custom_call.1} parent=39 // pred_check_branch
          %411 = sbr.rel (%p409) target = $region48
        $region47: #{tpu_custom_call.1} parent=39 // pred_region
          %p412 = scmp.lt.s32.totalorder %s38, 1
          %s413 = scalar_select %p412, %s38, 1
          %s414 = scalar_lea.vmem %s1, %s413
        $region48: #{tpu_custom_call.1} parent=39 // pred_fallthru
          _
        // Predicated region
        $region49: #{tpu_custom_call.1} parent=39 // pred_check
          %p415 = pneg %p117
        $region50: #{tpu_custom_call.1} parent=39 // pred_check_branch
          %417 = sbr.rel (%p415) target = $region52
        $region51: #{tpu_custom_call.1} parent=39 // pred_region
          %s418 = sand.u32 %s31, 1
          %s419 = scalar_lea.sflag [#allocation6], %s418
          %s420 = sand.u32 %s107, 1
          %s421 = scalar_lea.vmem [#allocation5], %s420
          %s423 = ssub.s32 16, 16
          %424 = vsyncadd %s419, %s423
          %s425 = smul.addr %s38, 16
          %s426 = scalar_lea.hbm %s2, %s425
          %s428 = sshll.u32 %s421, 4
          %s429 = int_to_ptr.vmem [resolvable:$true] %s428
          %431 = dma.hbm_to_vmem [thread:$0]  %s426, 16, %s429, %s419
        $region52: #{tpu_custom_call.1} parent=39 // pred_fallthru
          _
      $region40: #{tpu_custom_call.1} parent=5 // pred_fallthru
        _
      %p432 = scmp.le.s32.totalorder 1, %s31
      %p433 = scmp.lt.s32.totalorder %s31, 3
      %p434 = pnand %p432, %p433
      %p435 = pneg %p434
      // Predicated region
      $region53: #{tpu_custom_call.1} parent=5 // pred_check
        _
      $region54: #{tpu_custom_call.1} parent=5 // pred_check_branch
        %437 = sbr.rel (%p434) target = $region56
      $region55: #{tpu_custom_call.1} parent=5 // pred_region
        %s438 = ssub.s32 %s31, 1
        %s439 = sand.u32 %s58, 1
        %s440 = scalar_lea.sflag [#allocation3], %s439
        %s441 = sand.u32 %s58, 1
        %s442 = smul.addr %s441, 8
        %s443 = scalar_lea.vmem [#allocation2], %s442
        // Predicated region
        $region57: #{tpu_custom_call.1} parent=55 // pred_check
          %p444 = pneg %p71
        $region58: #{tpu_custom_call.1} parent=55 // pred_check_branch
          %446 = sbr.rel (%p444) target = $region60
        $region59: #{tpu_custom_call.1} parent=55 // pred_region
          %447 = dma.done %s440, 128
        $region60: #{tpu_custom_call.1} parent=55 // pred_fallthru
          _
        %s448 = sand.u32 %s36, 1
        %s449 = scalar_lea.sflag [#allocation6], %s448
        %s450 = sand.u32 %s110, 1
        %s451 = scalar_lea.vmem [#allocation5], %s450
        // Predicated region
        $region61: #{tpu_custom_call.1} parent=55 // pred_check
          %p452 = pneg %p123
        $region62: #{tpu_custom_call.1} parent=55 // pred_check_branch
          %454 = sbr.rel (%p452) target = $region64
        $region63: #{tpu_custom_call.1} parent=55 // pred_region
          %455 = dma.done %s449, 16
        $region64: #{tpu_custom_call.1} parent=55 // pred_fallthru
          _
        // Predicated region
        $region65: #{tpu_custom_call.1} parent=55 // pred_check
          %p456 = pneg %p144
        $region66: #{tpu_custom_call.1} parent=55 // pred_check_branch
          %458 = sbr.rel (%p456) target = $region68
        $region67: #{tpu_custom_call.1} parent=55 // pred_region
          %459 = dma.done [#allocation6], 256
        $region68: #{tpu_custom_call.1} parent=55 // pred_fallthru
          _
        // Predicated region
        $region69: #{tpu_custom_call.1} parent=55 // pred_check
          %p460 = pneg %p165
        $region70: #{tpu_custom_call.1} parent=55 // pred_check_branch
          %462 = sbr.rel (%p460) target = $region72
        $region71: #{tpu_custom_call.1} parent=55 // pred_region
          %463 = dma.done [#allocation9], 256
        $region72: #{tpu_custom_call.1} parent=55 // pred_fallthru
          _
        %s464 = sand.u32 %s58, 1
        %s465 = scalar_lea.sflag [#allocation3], %s464
        %s466 = sand.u32 %s58, 1
        %s467 = smul.addr %s466, 8
        %s468 = scalar_lea.vmem [#allocation2], %s467
        %p469 = pneg %p71
        %p470 = pneg %p68
        %p471 = scmp.lt.s32.totalorder %s40, 1
        %s472 = scalar_select %p471, %s40, 1
        %s473 = scalar_lea.vmem %s1, %s472
        %p474 = pneg %p97
        %p475 = pneg %p94
        %s476 = sand.u32 %s36, 1
        %s477 = scalar_lea.sflag [#allocation6], %s476
        %s478 = sand.u32 %s110, 1
        %s479 = scalar_lea.vmem [#allocation5], %s478
        %p480 = pneg %p123
        %p481 = pneg %p120
        %p482 = pneg %p144
        %p483 = pneg %p141
        %p484 = pneg %p165
        %p485 = pneg %p162
        %p486 = pneg %p186
        %p487 = pneg %p183
        %p488 = pneg %p207
        %p489 = pneg %p204
        %p490 = pneg %p228
        %p491 = pneg %p225
        %p492 = pneg %p249
        %p493 = pneg %p246
        %p494 = pneg %p277
        %p495 = pneg %p274
        %s496 = sand.u32 %s264, 1
        %s497 = scalar_lea.sflag [#allocation4], %s496
        %s498 = sand.u32 %s264, 1
        %s499 = smul.addr %s498, 4
        %s500 = scalar_lea.vmem [#allocation10], %s499
        %p501 = pneg %p305
        %p502 = pneg %p302
        %s503 = sand.u32 %s36, 1
        %s504 = scalar_lea.sflag [#allocation12], %s503
        %s505 = sand.u32 %s292, 1
        %s506 = smul.addr %s505, 4
        %s507 = scalar_lea.vmem [#allocation11], %s506
        %p508 = pneg %p333
        %p509 = pneg %p330
        %s510 = sand.u32 %s36, 1
        %s511 = scalar_lea.sflag [#allocation12], %s510
        %s512 = sand.u32 %s320, 1
        %s513 = smul.addr %s512, 4
        %s514 = scalar_lea.vmem [#allocation13], %s513
        %p515 = scmp.lt.s32.totalorder %s40, 1
        %s516 = scalar_select %p515, %s40, 1
        %s517 = scalar_lea.vmem %s1, %s516
        %v519 = vld [vmem:[%s443] sm:$0xff]
        %vm520 = vcmask 261120
        %v521 = vsel %vm520, %v519, 0.0
        %522 = vadd.xlane.f32.xlu0 %v521
        %v523 = vpop.xlane.xlu0 %522
        %v524 = vrcp.pop 32.0
        %v525 = vmul.f32 %v523, %v524
        %v526 = vsub.f32 %v519, %v525
        %v527 = vmul.f32 %v526, %v526
        %v528 = vsel %vm520, %v527, 0.0
        %529 = vadd.xlane.f32.xlu0 %v528
        %v530 = vpop.xlane.xlu0 %529
        %v531 = vmul.f32 %v530, %v524
        %v532 = vadd.f32 %v531, 1e-06
        %v533 = vrsqrt.pop %v532
        %v534 = vmul.f32 %v526, %v533
        %v535 = vld [vmem:[%s451] sm:$0x1]
        %v536 = vadd.f32 %v535, 1.0
        %v538 = vlaneseq
        %v539 = vshrl.u32 %v538, 7
        %v540 = vsub.s32 0, %v539
        %v541 = vrot.slane %v536, %v540
        %v543 = vmul.f32 %v534, %v541
        %v544 = vld [vmem:[%s517] sm:$0x1]
        %v546 = vlaneseq
        %v547 = vshrl.u32 %v546, 7
        %v548 = vsub.s32 0, %v547
        %v549 = vrot.slane %v544, %v548
        %v551 = vadd.f32 %v543, %v549
        %v552 = vpack.c.bf16 %v551, %v551
        %v553 = vld [vmem:[#allocation7] sm:$0xf]
        %v554 = vld [vmem:[#allocation7 + $0x4] sm:$0xf]
        %v555 = vld [vmem:[#allocation7 + $0x8] sm:$0xf]
        %v556 = vld [vmem:[#allocation7 + $0xc] sm:$0xf]
        %v557 = vld [vmem:[%s6] sm:$0x1]
        %v559 = vlaneseq
        %v560 = vshrl.u32 %v559, 7
        %v561 = vsub.s32 0, %v560
        %v562 = vrot.slane %v557, %v561
        %v568 = vunpack.c.l.b16 %v553
        %v569 = vunpack.c.l.b16 %v554
        %v570 = vunpack.c.l.b16 %v555
        %v571 = vunpack.c.l.b16 %v556
        %v572 = vpack.c.b16 %v569, %v568
        %v573 = vpack.c.b16 %v571, %v570
        %v577 = vsel %vm520, %v552, 0
        %579 = vmatprep.subr.bf16.mxu0 0
        %580 = vmatpush1.bf16.msra.mxu0 %v572
        %581 = vmatprep.subr.bf16.mxu0 0
        %582 = vmatpush1.bf16.msra.mxu0 %v573
        %583 = vmatprep.subr.bf16.mxu0 0
        %584 = vmatpush1.bf16.msra.mxu0 0
        %585 = vmatprep.subr.bf16.mxu0 0
        %586 = vmatpush1.bf16.msra.mxu0 0
        %587 = vmatprep.subr.bf16.mxu0 0
        %588 = vmatpush1.bf16.msra.mxu0 0
        %589 = vmatprep.subr.bf16.mxu0 0
        %590 = vmatpush1.bf16.msra.mxu0 0
        %591 = vmatprep.subr.bf16.mxu0 0
        %592 = vmatpush1.bf16.msra.mxu0 0
        %593 = vmatprep.subr.bf16.mxu0 0
        %594 = vmatpush1.bf16.msra.mxu0 0
        %595 = vmatprep.subr.bf16.mxu0 0
        %596 = vmatpush1.bf16.msra.mxu0 0
        %597 = vmatprep.subr.bf16.mxu0 0
        %598 = vmatpush1.bf16.msra.mxu0 0
        %599 = vmatprep.subr.bf16.mxu0 0
        %600 = vmatpush1.bf16.msra.mxu0 0
        %601 = vmatprep.subr.bf16.mxu0 0
        %602 = vmatpush1.bf16.msra.mxu0 0
        %603 = vmatprep.subr.bf16.mxu0 0
        %604 = vmatpush1.bf16.msra.mxu0 0
        %605 = vmatprep.subr.bf16.mxu0 0
        %606 = vmatpush1.bf16.msra.mxu0 0
        %607 = vmatprep.subr.bf16.mxu0 0
        %608 = vmatpush1.bf16.msra.mxu0 0
        %609 = vmatprep.subr.bf16.mxu0 0
        %610 = vmatpush1.bf16.msra.mxu0 0
        %611 = vmatprep.mubr.bf16.mxu0 0
        %612 = vmatmul.mubr.bf16.gmra.mrb[0].mxu0 %v577
        %v613 = vpop.f32.mrb[0].mxu0
        %v614 = vadd.f32 %v562, %v613
        %v615 = vpop.f32.mrb[0].mxu0
        %v616 = vpop.f32.mrb[0].mxu0
        %v617 = vpop.f32.mrb[0].mxu0
        %618 = vdwg.mxu0
        %v619 = vpack.c.bf16 %v614, %v614
        %vm620 = vcmask 257024
        %621 = vst.msk [vmem:[%s500] sm:$0xf] %vm620, %v619
        %v622 = vld [vmem:[#allocation8] sm:$0xf]
        %v623 = vld [vmem:[#allocation8 + $0x4] sm:$0xf]
        %v624 = vld [vmem:[#allocation8 + $0x8] sm:$0xf]
        %v625 = vld [vmem:[#allocation8 + $0xc] sm:$0xf]
        %v626 = vld [vmem:[%s7] sm:$0x1]
        %v628 = vlaneseq
        %v629 = vshrl.u32 %v628, 7
        %v630 = vsub.s32 0, %v629
        %v631 = vrot.slane %v626, %v630
        %v637 = vunpack.c.l.b16 %v622
        %v638 = vunpack.c.l.b16 %v623
        %v639 = vunpack.c.l.b16 %v624
        %v640 = vunpack.c.l.b16 %v625
        %v641 = vpack.c.b16 %v638, %v637
        %v642 = vpack.c.b16 %v640, %v639
        %645 = vmatprep.subr.bf16.mxu0 0
        %646 = vmatpush1.bf16.msra.mxu0 %v641
        %647 = vmatprep.subr.bf16.mxu0 0
        %648 = vmatpush1.bf16.msra.mxu0 %v642
        %649 = vmatprep.subr.bf16.mxu0 0
        %650 = vmatpush1.bf16.msra.mxu0 0
        %651 = vmatprep.subr.bf16.mxu0 0
        %652 = vmatpush1.bf16.msra.mxu0 0
        %653 = vmatprep.subr.bf16.mxu0 0
        %654 = vmatpush1.bf16.msra.mxu0 0
        %655 = vmatprep.subr.bf16.mxu0 0
        %656 = vmatpush1.bf16.msra.mxu0 0
        %657 = vmatprep.subr.bf16.mxu0 0
        %658 = vmatpush1.bf16.msra.mxu0 0
        %659 = vmatprep.subr.bf16.mxu0 0
        %660 = vmatpush1.bf16.msra.mxu0 0
        %661 = vmatprep.subr.bf16.mxu0 0
        %662 = vmatpush1.bf16.msra.mxu0 0
        %663 = vmatprep.subr.bf16.mxu0 0
        %664 = vmatpush1.bf16.msra.mxu0 0
        %665 = vmatprep.subr.bf16.mxu0 0
        %666 = vmatpush1.bf16.msra.mxu0 0
        %667 = vmatprep.subr.bf16.mxu0 0
        %668 = vmatpush1.bf16.msra.mxu0 0
        %669 = vmatprep.subr.bf16.mxu0 0
        %670 = vmatpush1.bf16.msra.mxu0 0
        %671 = vmatprep.subr.bf16.mxu0 0
        %672 = vmatpush1.bf16.msra.mxu0 0
        %673 = vmatprep.subr.bf16.mxu0 0
        %674 = vmatpush1.bf16.msra.mxu0 0
        %675 = vmatprep.subr.bf16.mxu0 0
        %676 = vmatpush1.bf16.msra.mxu0 0
        %677 = vmatprep.mubr.bf16.mxu0 0
        %678 = vmatmul.mubr.bf16.gmra.mrb[0].mxu0 %v577
        %v679 = vpop.f32.mrb[0].mxu0
        %v680 = vadd.f32 %v631, %v679
        %v681 = vpop.f32.mrb[0].mxu0
        %v682 = vpop.f32.mrb[0].mxu0
        %v683 = vpop.f32.mrb[0].mxu0
        %684 = vdwg.mxu0
        %v685 = vpack.c.bf16 %v680, %v680
        %686 = vst.msk [vmem:[%s507] sm:$0xf] %vm620, %v685
        %v687 = vld [vmem:[%s5] sm:$0xf]
        %v688 = vld [vmem:[%s5 + $0x4] sm:$0xf]
        %v689 = vld [vmem:[%s5 + $0x8] sm:$0xf]
        %v690 = vld [vmem:[%s5 + $0xc] sm:$0xf]
        %v691 = vld [vmem:[%s8] sm:$0x1]
        %v693 = vlaneseq
        %v694 = vshrl.u32 %v693, 7
        %v695 = vsub.s32 0, %v694
        %v696 = vrot.slane %v691, %v695
        %v702 = vunpack.c.l.b16 %v687
        %v703 = vunpack.c.l.b16 %v688
        %v704 = vunpack.c.l.b16 %v689
        %v705 = vunpack.c.l.b16 %v690
        %v706 = vpack.c.b16 %v703, %v702
        %v707 = vpack.c.b16 %v705, %v704
        %710 = vmatprep.subr.bf16.mxu0 0
        %711 = vmatpush1.bf16.msra.mxu0 %v706
        %712 = vmatprep.subr.bf16.mxu0 0
        %713 = vmatpush1.bf16.msra.mxu0 %v707
        %714 = vmatprep.subr.bf16.mxu0 0
        %715 = vmatpush1.bf16.msra.mxu0 0
        %716 = vmatprep.subr.bf16.mxu0 0
        %717 = vmatpush1.bf16.msra.mxu0 0
        %718 = vmatprep.subr.bf16.mxu0 0
        %719 = vmatpush1.bf16.msra.mxu0 0
        %720 = vmatprep.subr.bf16.mxu0 0
        %721 = vmatpush1.bf16.msra.mxu0 0
        %722 = vmatprep.subr.bf16.mxu0 0
        %723 = vmatpush1.bf16.msra.mxu0 0
        %724 = vmatprep.subr.bf16.mxu0 0
        %725 = vmatpush1.bf16.msra.mxu0 0
        %726 = vmatprep.subr.bf16.mxu0 0
        %727 = vmatpush1.bf16.msra.mxu0 0
        %728 = vmatprep.subr.bf16.mxu0 0
        %729 = vmatpush1.bf16.msra.mxu0 0
        %730 = vmatprep.subr.bf16.mxu0 0
        %731 = vmatpush1.bf16.msra.mxu0 0
        %732 = vmatprep.subr.bf16.mxu0 0
        %733 = vmatpush1.bf16.msra.mxu0 0
        %734 = vmatprep.subr.bf16.mxu0 0
        %735 = vmatpush1.bf16.msra.mxu0 0
        %736 = vmatprep.subr.bf16.mxu0 0
        %737 = vmatpush1.bf16.msra.mxu0 0
        %738 = vmatprep.subr.bf16.mxu0 0
        %739 = vmatpush1.bf16.msra.mxu0 0
        %740 = vmatprep.subr.bf16.mxu0 0
        %741 = vmatpush1.bf16.msra.mxu0 0
        %742 = vmatprep.mubr.bf16.mxu0 0
        %743 = vmatmul.mubr.bf16.gmra.mrb[0].mxu0 %v577
        %v744 = vpop.f32.mrb[0].mxu0
        %v745 = vadd.f32 %v696, %v744
        %v746 = vpop.f32.mrb[0].mxu0
        %v747 = vpop.f32.mrb[0].mxu0
        %v748 = vpop.f32.mrb[0].mxu0
        %749 = vdwg.mxu0
        %v750 = vpack.c.bf16 %v745, %v745
        %751 = vst.msk [vmem:[%s514] sm:$0xf] %vm620, %v750
        %s752 = sand.u32 %s264, 1
        %s753 = scalar_lea.sflag [#allocation4], %s752
        %s754 = sand.u32 %s264, 1
        %s755 = smul.addr %s754, 4
        %s756 = scalar_lea.vmem [#allocation10], %s755
        %s757 = sand.u32 %s36, 1
        %s758 = scalar_lea.sflag [#allocation12], %s757
        %s759 = sand.u32 %s292, 1
        %s760 = smul.addr %s759, 4
        %s761 = scalar_lea.vmem [#allocation11], %s760
        %s762 = sand.u32 %s36, 1
        %s763 = scalar_lea.sflag [#allocation12], %s762
        %s764 = sand.u32 %s320, 1
        %s765 = smul.addr %s764, 4
        %s766 = scalar_lea.vmem [#allocation13], %s765
        // Predicated region
        $region73: #{tpu_custom_call.1} parent=55 // pred_check
          %p767 = pneg %p274
        $region74: #{tpu_custom_call.1} parent=55 // pred_check_branch
          %769 = sbr.rel (%p767) target = $region76
        $region75: #{tpu_custom_call.1} parent=55 // pred_region
          %s771 = ssub.s32 64, 64
          %772 = vsyncadd %s753, %s771
          %s773 = sadd.s32 %s41, %s40
          %s774 = smul.addr %s773, 64
          %s775 = scalar_lea.hbm %s9, %s774
          %s777 = sshll.u32 %s756, 4
          %s778 = int_to_ptr.vmem [resolvable:$true] %s777
          %780 = dma.vmem_to_hbm [thread:$0]  %s778, 64, %s775, %s753
        $region76: #{tpu_custom_call.1} parent=55 // pred_fallthru
          _
        // Predicated region
        $region77: #{tpu_custom_call.1} parent=55 // pred_check
          %p781 = pneg %p302
        $region78: #{tpu_custom_call.1} parent=55 // pred_check_branch
          %783 = sbr.rel (%p781) target = $region80
        $region79: #{tpu_custom_call.1} parent=55 // pred_region
          %s785 = ssub.s32 64, 64
          %786 = vsyncadd %s758, %s785
          %s787 = sadd.s32 %s41, %s40
          %s788 = smul.addr %s787, 64
          %s789 = scalar_lea.hbm %s10, %s788
          %s791 = sshll.u32 %s761, 4
          %s792 = int_to_ptr.vmem [resolvable:$true] %s791
          %794 = dma.vmem_to_hbm [thread:$0]  %s792, 64, %s789, %s758
        $region80: #{tpu_custom_call.1} parent=55 // pred_fallthru
          _
        // Predicated region
        $region81: #{tpu_custom_call.1} parent=55 // pred_check
          %p795 = pneg %p330
        $region82: #{tpu_custom_call.1} parent=55 // pred_check_branch
          %797 = sbr.rel (%p795) target = $region84
        $region83: #{tpu_custom_call.1} parent=55 // pred_region
          %s799 = ssub.s32 64, 64
          %800 = vsyncadd %s763, %s799
          %s801 = sadd.s32 %s41, %s40
          %s802 = smul.addr %s801, 64
          %s803 = scalar_lea.hbm %s11, %s802
          %s805 = sshll.u32 %s766, 4
          %s806 = int_to_ptr.vmem [resolvable:$true] %s805
          %808 = dma.vmem_to_hbm [thread:$0]  %s806, 64, %s803, %s763
        $region84: #{tpu_custom_call.1} parent=55 // pred_fallthru
          _
      $region56: #{tpu_custom_call.1} parent=5 // pred_fallthru
        _
      %p809 = scmp.le.s32.totalorder 2, %s31
      // Predicated region
      $region85: #{tpu_custom_call.1} parent=5 // pred_check
        %p810 = pneg %p809
      $region86: #{tpu_custom_call.1} parent=5 // pred_check_branch
        %812 = sbr.rel (%p810) target = $region88
      $region87: #{tpu_custom_call.1} parent=5 // pred_region
        %s813 = ssub.s32 %s31, 2
        // Predicated region
        $region89: #{tpu_custom_call.1} parent=87 // pred_check
          %p814 = pneg %p280
        $region90: #{tpu_custom_call.1} parent=87 // pred_check_branch
          %816 = sbr.rel (%p814) target = $region92
        $region91: #{tpu_custom_call.1} parent=87 // pred_region
          %s817 = sand.u32 %s265, 1
          %s818 = scalar_lea.sflag [#allocation4], %s817
          %s819 = sand.u32 %s265, 1
          %s820 = smul.addr %s819, 4
          %s821 = scalar_lea.vmem [#allocation10], %s820
          %822 = dma.done %s818, 64
        $region92: #{tpu_custom_call.1} parent=87 // pred_fallthru
          _
        // Predicated region
        $region93: #{tpu_custom_call.1} parent=87 // pred_check
          %p823 = pneg %p308
        $region94: #{tpu_custom_call.1} parent=87 // pred_check_branch
          %825 = sbr.rel (%p823) target = $region96
        $region95: #{tpu_custom_call.1} parent=87 // pred_region
          %s826 = sand.u32 %s37, 1
          %s827 = scalar_lea.sflag [#allocation12], %s826
          %s828 = sand.u32 %s293, 1
          %s829 = smul.addr %s828, 4
          %s830 = scalar_lea.vmem [#allocation11], %s829
          %831 = dma.done %s827, 64
        $region96: #{tpu_custom_call.1} parent=87 // pred_fallthru
          _
        // Predicated region
        $region97: #{tpu_custom_call.1} parent=87 // pred_check
          %p832 = pneg %p336
        $region98: #{tpu_custom_call.1} parent=87 // pred_check_branch
          %834 = sbr.rel (%p832) target = $region100
        $region99: #{tpu_custom_call.1} parent=87 // pred_region
          %s835 = sand.u32 %s37, 1
          %s836 = scalar_lea.sflag [#allocation12], %s835
          %s837 = sand.u32 %s321, 1
          %s838 = smul.addr %s837, 4
          %s839 = scalar_lea.vmem [#allocation13], %s838
          %840 = dma.done %s836, 64
        $region100: #{tpu_custom_call.1} parent=87 // pred_fallthru
          _
      $region88: #{tpu_custom_call.1} parent=5 // pred_fallthru
        _
    $region6: #{tpu_custom_call.1} parent=1 // loop_footer
      %s35 = sadd.s32 1, %s31
    $region7: #{tpu_custom_call.1} parent=1 // loop_footer_branch
      %30 = sbr.rel target = $region3
    $region8: #{tpu_custom_call.1} parent=1 // loop_exit
      _
    %841 = vsyncpa [#allocation3], 1
    %s842 = scalar_lea.sflag [#allocation3], 1
    %843 = vsyncpa %s842, 1
    %844 = vsyncpa [#allocation6], 1
    %s845 = scalar_lea.sflag [#allocation6], 1
    %846 = vsyncpa %s845, 1
    %847 = vsyncpa [#allocation9], 1
    %848 = vsyncpa [#allocation4], 1
    %s849 = scalar_lea.sflag [#allocation4], 1
    %850 = vsyncpa %s849, 1
    %851 = vsyncpa [#allocation12], 1
    %s852 = scalar_lea.sflag [#allocation12], 1
    %853 = vsyncpa %s852, 1

</llo_original>
